<compile_context>
chip_gen: v6e
topology: v6e:2x2x1
jax: 0.10.0
libtpu: 0.0.40
codegen_flags: <defaults>
</compile_context>

<pallas_src>
import jax
import jax.numpy as jnp
from jax.experimental import pallas as pl
from jax.experimental.pallas import tpu as pltpu

LANE = 128


def _make_chair_kernel(agent_num: int):
    def kernel(*refs):
        diff_refs = refs[:agent_num]
        w1_ref, b1_ref, w2_ref, b2_ref, r_ref, out_ref = refs[agent_num:]

        # ---- layer 1: sum_i diff_i @ W1[i]  (bf16 MXU, f32 accumulation) ----
        h = jnp.dot(diff_refs[0][...], w1_ref[0],
                    preferred_element_type=jnp.float32)
        for i in range(1, agent_num):
            h = h + jnp.dot(diff_refs[i][...], w1_ref[i],
                            preferred_element_type=jnp.float32)
        h = jnp.maximum(h + b1_ref[...], 0.0)            # bias + ReLU in f32

        # ---- layer 2: lane-dense logits over the padded agent axis ---------
        logits = jnp.dot(h.astype(w2_ref.dtype), w2_ref[...],
                         preferred_element_type=jnp.float32) + b2_ref[...]

        # Numerically stable softmax. Padded lanes carry a -inf bias, so their
        # exp() is exactly 0 and the normalization is unchanged.
        m = jnp.max(logits, axis=-1, keepdims=True)
        e = jnp.exp(logits - m)
        denom = jnp.sum(e, axis=-1, keepdims=True)
        p = e * pl.reciprocal(denom, approx=True)        # EUP slot, ~free

        # ---- weighted sum of per-agent results (pad lanes of r are 0) ------
        out_ref[...] = jnp.sum(r_ref[...] * p, axis=-1, keepdims=True)

    return kernel


def chair_model(diff_list, r_list, w1, b1, w2, b2, *, block_b: int = 128):
    """diff_list: agent_num tensors of shape (B, E); r_list: agent_num (B, 1)."""
    agent_num = len(diff_list)
    B, E = diff_list[0].shape

    a_pad = pl.cdiv(agent_num, LANE) * LANE              # agent axis -> 128 lanes
    b_pad = pl.cdiv(B, block_b) * block_b                # batch -> tile multiple

    # ---- wrapper-side layout prep (no activation concatenation) ------------
    diffs = [jnp.pad(d, ((0, b_pad - B), (0, 0))).astype(jnp.bfloat16)
             for d in diff_list]
    w1_blocks = w1.reshape(agent_num, E, E).astype(jnp.bfloat16)   # per-agent
    b1_row = b1.reshape(1, E).astype(jnp.float32)
    w2_pad = jnp.pad(w2, ((0, 0), (0, a_pad - agent_num))).astype(jnp.bfloat16)
    b2_pad = jnp.concatenate(
        [b2.reshape(1, agent_num).astype(jnp.float32),
         jnp.full((1, a_pad - agent_num), -jnp.inf, jnp.float32)], axis=-1)
    r_stacked = jnp.concatenate([r.reshape(B, 1) for r in r_list], axis=-1)
    r_pad = jnp.pad(r_stacked.astype(jnp.float32),
                    ((0, b_pad - B), (0, a_pad - agent_num)))

    grid = (b_pad // block_b,)

    diff_spec = pl.BlockSpec((block_b, E), lambda i: (i, 0))
    in_specs = [diff_spec] * agent_num + [
        pl.BlockSpec((agent_num, E, E), lambda i: (0, 0, 0)),  # W1: VMEM-resident
        pl.BlockSpec((1, E), lambda i: (0, 0)),                # b1: resident
        pl.BlockSpec((E, a_pad), lambda i: (0, 0)),            # W2: resident
        pl.BlockSpec((1, a_pad), lambda i: (0, 0)),            # b2: resident
        pl.BlockSpec((block_b, a_pad), lambda i: (i, 0)),      # r: streamed
    ]
    out_spec = pl.BlockSpec((block_b, 1), lambda i: (i, 0))

    bytes_accessed = int(
        sum(d.size * d.dtype.itemsize for d in diffs)
        + w1_blocks.size * 2 + b1_row.size * 4
        + w2_pad.size * 2 + b2_pad.size * 4
        + r_pad.size * 4 + b_pad * 4)
    cost = pl.CostEstimate(
        flops=2 * b_pad * (agent_num * E * E + E * a_pad),
        transcendentals=b_pad * a_pad,
        bytes_accessed=bytes_accessed)

    out_pad = pl.pallas_call(
        _make_chair_kernel(agent_num),
        out_shape=jax.ShapeDtypeStruct((b_pad, 1), jnp.float32),
        grid_spec=pltpu.PrefetchScalarGridSpec(
            num_scalar_prefetch=0,
            grid=grid,
            in_specs=in_specs,
            out_specs=out_spec),
        compiler_params=pltpu.CompilerParams(
            dimension_semantics=("parallel",),      # shard batch across TCs (v7x)
            vmem_limit_bytes=32 * 1024 * 1024),
        cost_estimate=cost,
    )(*diffs, w1_blocks, b1_row, w2_pad, b2_pad, r_pad)

    return out_pad[:B]


def init_params(key, agent_num, embed_size):
    """Mimics nn.Linear's U(-1/sqrt(fan_in), 1/sqrt(fan_in)) init."""
    k1, k2, k3, k4 = jax.random.split(key, 4)
    fan1 = agent_num * embed_size
    lim1 = 1.0 / jnp.sqrt(fan1)
    w1 = jax.random.uniform(k1, (fan1, embed_size), jnp.float32, -lim1, lim1)
    b1 = jax.random.uniform(k2, (1, embed_size), jnp.float32, -lim1, lim1)
    fan2 = embed_size
    lim2 = 1.0 / jnp.sqrt(fan2)
    w2 = jax.random.uniform(k3, (fan2, agent_num), jnp.float32, -lim2, lim2)
    b2 = jax.random.uniform(k4, (1, agent_num), jnp.float32, -lim2, lim2)
    return w1, b1, w2, b2


def reference(diff_list, r_list, w1, b1, w2, b2):
    diff = jnp.concatenate(diff_list, axis=-1)
    h = jnp.maximum(diff @ w1 + b1, 0.0)
    p = jax.nn.softmax(h @ w2 + b2, axis=-1)
    r = jnp.concatenate([r.reshape(-1, 1) for r in r_list], axis=-1)
    return jnp.sum(r * p, axis=-1, keepdims=True)


if __name__ == "__main__":
    AGENT_NUM = 3
    EMBED_SIZE = 128     # small TPU-friendly stand-in for the module's 512
    BATCH = 300          # deliberately not a multiple of the 128-row tile

    key = jax.random.PRNGKey(0)
    kp, kd, kr = jax.random.split(key, 3)
    w1, b1, w2, b2 = init_params(kp, AGENT_NUM, EMBED_SIZE)

    diff_list = [
        jax.random.normal(jax.random.fold_in(kd, i),
                          (BATCH, EMBED_SIZE), jnp.float32)
        for i in range(AGENT_NUM)
    ]
    r_list = [
        jax.random.normal(jax.random.fold_in(kr, i), (BATCH, 1), jnp.float32)
        for i in range(AGENT_NUM)
    ]

    out = chair_model(diff_list, r_list, w1, b1, w2, b2, block_b=128)
    out = jax.block_until_ready(out)

    ref = reference(diff_list, r_list, w1, b1, w2, b2)
    assert out.shape == (BATCH, 1), out.shape
    # bf16 MXU operands + approx reciprocal => looser tolerance vs f32 reference
    assert jnp.allclose(out, ref, atol=5e-2, rtol=5e-2), \
        float(jnp.max(jnp.abs(out - ref)))

    print("KERNEL_OK")
</pallas_src>

<mosaic_0001>
module attributes {stable_mosaic.version = 11 : i64} {
  func.func @kernel(%arg0: i32, %arg1: memref<128x128xbf16, #tpu.memory_space<vmem>>, %arg2: memref<128x128xbf16, #tpu.memory_space<vmem>>, %arg3: memref<128x128xbf16, #tpu.memory_space<vmem>>, %arg4: memref<3x128x128xbf16, #tpu.memory_space<vmem>>, %arg5: memref<1x128xf32, #tpu.memory_space<vmem>>, %arg6: memref<128x128xbf16, #tpu.memory_space<vmem>>, %arg7: memref<1x128xf32, #tpu.memory_space<vmem>>, %arg8: memref<128x128xf32, #tpu.memory_space<vmem>>, %arg9: memref<128x1xf32, #tpu.memory_space<vmem>>) attributes {dimension_semantics = [#tpu.dimension_semantics<parallel>], iteration_bounds = array<i64: 3>, scalar_prefetch = 0 : i64, scratch_operands = 0 : i64, tpu.core_type = #tpu.core_type<tc>, window_params = [{transform_indices = @transform_0, window_bounds = array<i64: 128, 128>}, {transform_indices = @transform_1, window_bounds = array<i64: 128, 128>}, {transform_indices = @transform_2, window_bounds = array<i64: 128, 128>}, {pipeline_mode = #tpu.pipeline_mode<synchronous>, transform_indices = @transform_3, window_bounds = array<i64: 3, 128, 128>}, {pipeline_mode = #tpu.pipeline_mode<synchronous>, transform_indices = @transform_4, window_bounds = array<i64: 1, 128>}, {pipeline_mode = #tpu.pipeline_mode<synchronous>, transform_indices = @transform_5, window_bounds = array<i64: 128, 128>}, {pipeline_mode = #tpu.pipeline_mode<synchronous>, transform_indices = @transform_6, window_bounds = array<i64: 1, 128>}, {transform_indices = @transform_7, window_bounds = array<i64: 128, 128>}, {transform_indices = @transform_8, window_bounds = array<i64: 128, 1>}]} {
    %c0 = arith.constant 0 : index
    %c0_0 = arith.constant 0 : index
    %0 = vector.load %arg1[%c0, %c0_0] : memref<128x128xbf16, #tpu.memory_space<vmem>>, vector<128x128xbf16>
    %c0_1 = arith.constant 0 : index
    %c0_2 = arith.constant 0 : index
    %c0_3 = arith.constant 0 : index
    %1 = vector.load %arg4[%c0_1, %c0_2, %c0_3] : memref<3x128x128xbf16, #tpu.memory_space<vmem>>, vector<1x128x128xbf16>
    %2 = vector.shape_cast %1 : vector<1x128x128xbf16> to vector<128x128xbf16>
    %cst = arith.constant dense<0.000000e+00> : vector<128x128xf32>
    %3 = tpu.matmul %0, %2, %cst {dimension_numbers = #tpu.dot_dimension_numbers<[1], [0], [0], [1], [0, 0, 1, 1], [], []>} : vector<128x128xbf16>, vector<128x128xbf16>, vector<128x128xf32> -> vector<128x128xf32>
    %c0_4 = arith.constant 0 : index
    %c0_5 = arith.constant 0 : index
    %4 = vector.load %arg2[%c0_4, %c0_5] : memref<128x128xbf16, #tpu.memory_space<vmem>>, vector<128x128xbf16>
    %c1 = arith.constant 1 : index
    %c0_6 = arith.constant 0 : index
    %c0_7 = arith.constant 0 : index
    %5 = vector.load %arg4[%c1, %c0_6, %c0_7] : memref<3x128x128xbf16, #tpu.memory_space<vmem>>, vector<1x128x128xbf16>
    %6 = vector.shape_cast %5 : vector<1x128x128xbf16> to vector<128x128xbf16>
    %cst_8 = arith.constant dense<0.000000e+00> : vector<128x128xf32>
    %7 = tpu.matmul %4, %6, %cst_8 {dimension_numbers = #tpu.dot_dimension_numbers<[1], [0], [0], [1], [0, 0, 1, 1], [], []>} : vector<128x128xbf16>, vector<128x128xbf16>, vector<128x128xf32> -> vector<128x128xf32>
    %8 = arith.addf %3, %7 : vector<128x128xf32>
    %c0_9 = arith.constant 0 : index
    %c0_10 = arith.constant 0 : index
    %9 = vector.load %arg3[%c0_9, %c0_10] : memref<128x128xbf16, #tpu.memory_space<vmem>>, vector<128x128xbf16>
    %c2 = arith.constant 2 : index
    %c0_11 = arith.constant 0 : index
    %c0_12 = arith.constant 0 : index
    %10 = vector.load %arg4[%c2, %c0_11, %c0_12] : memref<3x128x128xbf16, #tpu.memory_space<vmem>>, vector<1x128x128xbf16>
    %11 = vector.shape_cast %10 : vector<1x128x128xbf16> to vector<128x128xbf16>
    %cst_13 = arith.constant dense<0.000000e+00> : vector<128x128xf32>
    %12 = tpu.matmul %9, %11, %cst_13 {dimension_numbers = #tpu.dot_dimension_numbers<[1], [0], [0], [1], [0, 0, 1, 1], [], []>} : vector<128x128xbf16>, vector<128x128xbf16>, vector<128x128xf32> -> vector<128x128xf32>
    %13 = arith.addf %8, %12 : vector<128x128xf32>
    %c0_14 = arith.constant 0 : index
    %c0_15 = arith.constant 0 : index
    %14 = vector.load %arg5[%c0_14, %c0_15] : memref<1x128xf32, #tpu.memory_space<vmem>>, vector<1x128xf32>
    %15 = vector.broadcast %14 : vector<1x128xf32> to vector<128x128xf32>
    %16 = arith.addf %13, %15 : vector<128x128xf32>
    %cst_16 = arith.constant 0.000000e+00 : f32
    %17 = vector.broadcast %cst_16 : f32 to vector<128x128xf32>
    %18 = arith.maximumf %16, %17 : vector<128x128xf32>
    %19 = arith.truncf %18 : vector<128x128xf32> to vector<128x128xbf16>
    %c0_17 = arith.constant 0 : index
    %c0_18 = arith.constant 0 : index
    %20 = vector.load %arg6[%c0_17, %c0_18] : memref<128x128xbf16, #tpu.memory_space<vmem>>, vector<128x128xbf16>
    %cst_19 = arith.constant dense<0.000000e+00> : vector<128x128xf32>
    %21 = tpu.matmul %19, %20, %cst_19 {dimension_numbers = #tpu.dot_dimension_numbers<[1], [0], [0], [1], [0, 0, 1, 1], [], []>} : vector<128x128xbf16>, vector<128x128xbf16>, vector<128x128xf32> -> vector<128x128xf32>
    %c0_20 = arith.constant 0 : index
    %c0_21 = arith.constant 0 : index
    %22 = vector.load %arg7[%c0_20, %c0_21] : memref<1x128xf32, #tpu.memory_space<vmem>>, vector<1x128xf32>
    %23 = vector.broadcast %22 : vector<1x128xf32> to vector<128x128xf32>
    %24 = arith.addf %21, %23 : vector<128x128xf32>
    %cst_22 = arith.constant dense<0xFF800000> : vector<128xf32>
    %25 = vector.multi_reduction <maximumf>, %24, %cst_22 [1] : vector<128x128xf32> to vector<128xf32>
    %26 = vector.shape_cast %25 : vector<128xf32> to vector<128x1xf32>
    %27 = vector.broadcast %26 : vector<128x1xf32> to vector<128x128xf32>
    %28 = arith.subf %24, %27 : vector<128x128xf32>
    %29 = math.exp %28 : vector<128x128xf32>
    %cst_23 = arith.constant dense<0.000000e+00> : vector<128xf32>
    %30 = vector.multi_reduction <add>, %29, %cst_23 [1] : vector<128x128xf32> to vector<128xf32>
    %31 = vector.shape_cast %30 : vector<128xf32> to vector<128x1xf32>
    %32 = tpu.reciprocal %31 {approx = true} : vector<128x1xf32> -> vector<128x1xf32>
    %33 = vector.broadcast %32 : vector<128x1xf32> to vector<128x128xf32>
    %34 = arith.mulf %29, %33 : vector<128x128xf32>
    %c0_24 = arith.constant 0 : index
    %c0_25 = arith.constant 0 : index
    %35 = vector.load %arg8[%c0_24, %c0_25] : memref<128x128xf32, #tpu.memory_space<vmem>>, vector<128x128xf32>
    %36 = arith.mulf %35, %34 : vector<128x128xf32>
    %cst_26 = arith.constant dense<0.000000e+00> : vector<128xf32>
    %37 = vector.multi_reduction <add>, %36, %cst_26 [1] : vector<128x128xf32> to vector<128xf32>
    %38 = vector.shape_cast %37 : vector<128xf32> to vector<128x1xf32>
    %c0_27 = arith.constant 0 : index
    %c0_28 = arith.constant 0 : index
    %39 = vector.load %arg9[%c0_27, %c0_28] : memref<128x1xf32, #tpu.memory_space<vmem>>, vector<128x1xf32>
    tpu.vector_store %arg9[%c0_27, %c0_28], %38 {strides = array<i32>} : memref<128x1xf32, #tpu.memory_space<vmem>>, vector<128x1xf32>,
    return
  }
  func.func @transform_0(%arg0: i32) -> (i32, i32) {
    %c0_i32 = arith.constant 0 : i32
    %c0_i32_0 = arith.constant 0 : i32
    return %arg0, %c0_i32 : i32, i32
  }
  func.func @transform_1(%arg0: i32) -> (i32, i32) {
    %c0_i32 = arith.constant 0 : i32
    %c0_i32_0 = arith.constant 0 : i32
    return %arg0, %c0_i32 : i32, i32
  }
  func.func @transform_2(%arg0: i32) -> (i32, i32) {
    %c0_i32 = arith.constant 0 : i32
    %c0_i32_0 = arith.constant 0 : i32
    return %arg0, %c0_i32 : i32, i32
  }
  func.func @transform_3(%arg0: i32) -> (i32, i32, i32) {
    %c0_i32 = arith.constant 0 : i32
    %c0_i32_0 = arith.constant 0 : i32
    %c0_i32_1 = arith.constant 0 : i32
    %c0_i32_2 = arith.constant 0 : i32
    return %c0_i32, %c0_i32_0, %c0_i32_1 : i32, i32, i32
  }
  func.func @transform_4(%arg0: i32) -> (i32, i32) {
    %c0_i32 = arith.constant 0 : i32
    %c0_i32_0 = arith.constant 0 : i32
    %c0_i32_1 = arith.constant 0 : i32
    return %c0_i32, %c0_i32_0 : i32, i32
  }
  func.func @transform_5(%arg0: i32) -> (i32, i32) {
    %c0_i32 = arith.constant 0 : i32
    %c0_i32_0 = arith.constant 0 : i32
    %c0_i32_1 = arith.constant 0 : i32
    return %c0_i32, %c0_i32_0 : i32, i32
  }
  func.func @transform_6(%arg0: i32) -> (i32, i32) {
    %c0_i32 = arith.constant 0 : i32
    %c0_i32_0 = arith.constant 0 : i32
    %c0_i32_1 = arith.constant 0 : i32
    return %c0_i32, %c0_i32_0 : i32, i32
  }
  func.func @transform_7(%arg0: i32) -> (i32, i32) {
    %c0_i32 = arith.constant 0 : i32
    %c0_i32_0 = arith.constant 0 : i32
    return %arg0, %c0_i32 : i32, i32
  }
  func.func @transform_8(%arg0: i32) -> (i32, i32) {
    %c0_i32 = arith.constant 0 : i32
    %c0_i32_0 = arith.constant 0 : i32
    return %arg0, %c0_i32 : i32, i32
  }
}

</mosaic_0001>

<llo_original>
// kernel: tpu_custom_call.1
$region0: #{tpu_custom_call.1}
  #allocation0 [shape = 'u32[]', space=smem, size = 0x4, offset = 0x4, fixed_abs, tag = 'smem constant byte address 0x4 - core index']
  #allocation1 [shape = 'u32[144,128]{1,0:T(1,128)}', space=vmem, size = 0x12000, scoped, tag = 'internal scratch']
  %s0 = inlined_call_operand.hbm [shape: bf16[384,128], index: 0, kind: input, shape index: {}]
  %s1 = inlined_call_operand.hbm [shape: bf16[384,128], index: 1, kind: input, shape index: {}]
  %s2 = inlined_call_operand.hbm [shape: bf16[384,128], index: 2, kind: input, shape index: {}]
  %s3 = inlined_call_operand.hbm [shape: bf16[3,128,128], index: 3, kind: input, shape index: {}]
  %s4 = inlined_call_operand.vmem [shape: f32[1,128], index: 4, kind: input, shape index: {}]
  %s5 = inlined_call_operand.hbm [shape: bf16[128,128], index: 5, kind: input, shape index: {}]
  %s6 = inlined_call_operand.vmem [shape: f32[1,128], index: 6, kind: input, shape index: {}]
  %s7 = inlined_call_operand.hbm [shape: f32[384,128], index: 7, kind: input, shape index: {}]
  %s8 = inlined_call_operand.vmem [shape: f32[384,1], index: 8, kind: output, shape index: {}]
  %s9 = sld [smem:[#allocation0]]
  $region89: #{tpu_custom_call.1} parent=0
    _
  %s11 = ssub.s32 1, %s9
  %s12 = scalar_select 0, %s11, %s9
  $region1: #{tpu_custom_call.1} parent=0
    #allocation2 [shape = 'u8[65536]{0}', space=vmem, size = 0x10000, scoped, tag = 'input window, operand 0']
    #allocation3 [shape = 's32[2]{0}', space=sflag, size = 0x8, scoped, tag = 'scoped memory for tpu_custom_call.1']
    #allocation4 [shape = 'u8[65536]{0}', space=vmem, size = 0x10000, scoped, tag = 'input window, operand 1']
    #allocation5 [shape = 's32[2]{0}', space=sflag, size = 0x8, scoped, tag = 'scoped memory for tpu_custom_call.1']
    #allocation6 [shape = 'u8[65536]{0}', space=vmem, size = 0x10000, scoped, tag = 'input window, operand 2']
    #allocation7 [shape = 'u8[98304]{0}', space=vmem, size = 0x18000, scoped, tag = 'input window, operand 3, single buffered']
    #allocation8 [shape = 's32[1]{0}', space=sflag, size = 0x4, scoped, tag = 'scoped memory for tpu_custom_call.1']
    #allocation9 [shape = 'u8[32768]{0}', space=vmem, size = 0x8000, scoped, tag = 'input window, operand 5, single buffered']
    #allocation10 [shape = 'u8[131072]{0}', space=vmem, size = 0x20000, scoped, tag = 'input window, operand 7']
    #allocation11 [shape = 's32[2]{0}', space=sflag, size = 0x8, scoped, tag = 'scoped memory for tpu_custom_call.1']
    %13 = vsyncpa [#allocation3], 0
    %s14 = scalar_lea.sflag [#allocation3], 1
    %15 = vsyncpa %s14, 0
    %16 = vsyncpa [#allocation5], 0
    %s17 = scalar_lea.sflag [#allocation5], 1
    %18 = vsyncpa %s17, 0
    %19 = vsyncpa [#allocation8], 0
    %20 = vsyncpa [#allocation11], 0
    %s21 = scalar_lea.sflag [#allocation11], 1
    %22 = vsyncpa %s21, 0
    loop: start=0, step=1, limit=5
    $region2: #{tpu_custom_call.1} parent=1 // loop_pre_header
      _
    $region3: #{tpu_custom_call.1} parent=1 // loop_header
      %s24 = sphi 0, %s28
      %p25 = scmp.ge.s32.totalorder %s24, 5
      %s34 = sphi 0, %s36
      %s37 = sphi 0, %s34
      %s38 = sphi 0, %s37
      %s54 = sphi 0, %s38
      %s60 = sphi 0, %s62
      %s63 = sphi 0, %s60
      %s64 = sphi 0, %s63
      %s80 = sphi 0, %s64
      %s86 = sphi 0, %s88
      %s89 = sphi 0, %s86
      %s90 = sphi 0, %s89
      %s106 = sphi 0, %s90
      %s110 = sphi 0, %s110
      %s112 = sphi 0, %s110
      %s113 = sphi 0, %s112
      %s127 = sphi 0, %s113
      %s131 = sphi 0, %s131
      %s133 = sphi 0, %s131
      %s134 = sphi 0, %s133
      %s148 = sphi 0, %s134
      %s152 = sphi 0, %s152
      %s154 = sphi 0, %s152
      %s155 = sphi 0, %s154
      %s169 = sphi 0, %s155
      %s173 = sphi 0, %s173
      %s175 = sphi 0, %s173
      %s176 = sphi 0, %s175
      %s190 = sphi 0, %s176
      %s196 = sphi 0, %s198
      %s199 = sphi 0, %s196
      %s200 = sphi 0, %s199
      %s216 = sphi 0, %s200
      %s222 = sphi 0, %s224
      %s225 = sphi 0, %s222
      %s226 = sphi 0, %s225
      %s242 = sphi 0, %s226
    $region4: #{tpu_custom_call.1} parent=1 // loop_header_branch
      %27 = sbr.rel (%p25) target = $region8
    $region5: #{tpu_custom_call.1} parent=1 // loop_body
      %s29 = ssub.s32 %s24, 1
      %s30 = ssub.s32 %s24, 2
      %s31 = sadd.s32 %s24, 1
      %s32 = ssub.s32 %s24, %s31
      %p33 = scmp.eq.s32.totalorder %s32, 0
      %s35 = sadd.s32 %s34, 1
      %s36 = scalar_select %p33, %s34, %s35
      %p39 = pneg %p33
      %p40 = scmp.eq.s32.totalorder %s24, 2
      %p41 = por %p39, %p40
      %p42 = scmp.ne.s32.totalorder %s34, %s37
      %p43 = scmp.eq.s32.totalorder %s24, 0
      %p44 = por %p42, %p43
      %p45 = scmp.ne.s32.totalorder %s34, %s37
      %p46 = scmp.eq.s32.totalorder %s29, 2
      %p47 = por %p45, %p46
      %p48 = scmp.ne.s32.totalorder %s37, %s38
      %p49 = scmp.eq.s32.totalorder %s29, 0
      %p50 = por %p48, %p49
      %p51 = scmp.ne.s32.totalorder %s37, %s38
      %p52 = scmp.eq.s32.totalorder %s30, 2
      %p53 = por %p51, %p52
      %p55 = scmp.ne.s32.totalorder %s38, %s54
      %p56 = scmp.eq.s32.totalorder %s30, 0
      %p57 = por %p55, %p56
      %s58 = ssub.s32 %s24, %s31
      %p59 = scmp.eq.s32.totalorder %s58, 0
      %s61 = sadd.s32 %s60, 1
      %s62 = scalar_select %p59, %s60, %s61
      %p65 = pneg %p59
      %p66 = scmp.eq.s32.totalorder %s24, 2
      %p67 = por %p65, %p66
      %p68 = scmp.ne.s32.totalorder %s60, %s63
      %p69 = scmp.eq.s32.totalorder %s24, 0
      %p70 = por %p68, %p69
      %p71 = scmp.ne.s32.totalorder %s60, %s63
      %p72 = scmp.eq.s32.totalorder %s29, 2
      %p73 = por %p71, %p72
      %p74 = scmp.ne.s32.totalorder %s63, %s64
      %p75 = scmp.eq.s32.totalorder %s29, 0
      %p76 = por %p74, %p75
      %p77 = scmp.ne.s32.totalorder %s63, %s64
      %p78 = scmp.eq.s32.totalorder %s30, 2
      %p79 = por %p77, %p78
      %p81 = scmp.ne.s32.totalorder %s64, %s80
      %p82 = scmp.eq.s32.totalorder %s30, 0
      %p83 = por %p81, %p82
      %s84 = ssub.s32 %s24, %s31
      %p85 = scmp.eq.s32.totalorder %s84, 0
      %s87 = sadd.s32 %s86, 1
      %s88 = scalar_select %p85, %s86, %s87
      %p91 = pneg %p85
      %p92 = scmp.eq.s32.totalorder %s24, 2
      %p93 = por %p91, %p92
      %p94 = scmp.ne.s32.totalorder %s86, %s89
      %p95 = scmp.eq.s32.totalorder %s24, 0
      %p96 = por %p94, %p95
      %p97 = scmp.ne.s32.totalorder %s86, %s89
      %p98 = scmp.eq.s32.totalorder %s29, 2
      %p99 = por %p97, %p98
      %p100 = scmp.ne.s32.totalorder %s89, %s90
      %p101 = scmp.eq.s32.totalorder %s29, 0
      %p102 = por %p100, %p101
      %p103 = scmp.ne.s32.totalorder %s89, %s90
      %p104 = scmp.eq.s32.totalorder %s30, 2
      %p105 = por %p103, %p104
      %p107 = scmp.ne.s32.totalorder %s90, %s106
      %p108 = scmp.eq.s32.totalorder %s30, 0
      %p109 = por %p107, %p108
      %s111 = sadd.s32 %s110, 1
      %p114 = scmp.eq.s32.totalorder %s24, 2
      %p115 = scmp.ne.s32.totalorder %s110, %s112
      %p116 = scmp.eq.s32.totalorder %s24, 0
      %p117 = por %p115, %p116
      %p118 = scmp.ne.s32.totalorder %s110, %s112
      %p119 = scmp.eq.s32.totalorder %s29, 2
      %p120 = por %p118, %p119
      %p121 = scmp.ne.s32.totalorder %s112, %s113
      %p122 = scmp.eq.s32.totalorder %s29, 0
      %p123 = por %p121, %p122
      %p124 = scmp.ne.s32.totalorder %s112, %s113
      %p125 = scmp.eq.s32.totalorder %s30, 2
      %p126 = por %p124, %p125
      %p128 = scmp.ne.s32.totalorder %s113, %s127
      %p129 = scmp.eq.s32.totalorder %s30, 0
      %p130 = por %p128, %p129
      %s132 = sadd.s32 %s131, 1
      %p135 = scmp.eq.s32.totalorder %s24, 2
      %p136 = scmp.ne.s32.totalorder %s131, %s133
      %p137 = scmp.eq.s32.totalorder %s24, 0
      %p138 = por %p136, %p137
      %p139 = scmp.ne.s32.totalorder %s131, %s133
      %p140 = scmp.eq.s32.totalorder %s29, 2
      %p141 = por %p139, %p140
      %p142 = scmp.ne.s32.totalorder %s133, %s134
      %p143 = scmp.eq.s32.totalorder %s29, 0
      %p144 = por %p142, %p143
      %p145 = scmp.ne.s32.totalorder %s133, %s134
      %p146 = scmp.eq.s32.totalorder %s30, 2
      %p147 = por %p145, %p146
      %p149 = scmp.ne.s32.totalorder %s134, %s148
      %p150 = scmp.eq.s32.totalorder %s30, 0
      %p151 = por %p149, %p150
      %s153 = sadd.s32 %s152, 1
      %p156 = scmp.eq.s32.totalorder %s24, 2
      %p157 = scmp.ne.s32.totalorder %s152, %s154
      %p158 = scmp.eq.s32.totalorder %s24, 0
      %p159 = por %p157, %p158
      %p160 = scmp.ne.s32.totalorder %s152, %s154
      %p161 = scmp.eq.s32.totalorder %s29, 2
      %p162 = por %p160, %p161
      %p163 = scmp.ne.s32.totalorder %s154, %s155
      %p164 = scmp.eq.s32.totalorder %s29, 0
      %p165 = por %p163, %p164
      %p166 = scmp.ne.s32.totalorder %s154, %s155
      %p167 = scmp.eq.s32.totalorder %s30, 2
      %p168 = por %p166, %p167
      %p170 = scmp.ne.s32.totalorder %s155, %s169
      %p171 = scmp.eq.s32.totalorder %s30, 0
      %p172 = por %p170, %p171
      %s174 = sadd.s32 %s173, 1
      %p177 = scmp.eq.s32.totalorder %s24, 2
      %p178 = scmp.ne.s32.totalorder %s173, %s175
      %p179 = scmp.eq.s32.totalorder %s24, 0
      %p180 = por %p178, %p179
      %p181 = scmp.ne.s32.totalorder %s173, %s175
      %p182 = scmp.eq.s32.totalorder %s29, 2
      %p183 = por %p181, %p182
      %p184 = scmp.ne.s32.totalorder %s175, %s176
      %p185 = scmp.eq.s32.totalorder %s29, 0
      %p186 = por %p184, %p185
      %p187 = scmp.ne.s32.totalorder %s175, %s176
      %p188 = scmp.eq.s32.totalorder %s30, 2
      %p189 = por %p187, %p188
      %p191 = scmp.ne.s32.totalorder %s176, %s190
      %p192 = scmp.eq.s32.totalorder %s30, 0
      %p193 = por %p191, %p192
      %s194 = ssub.s32 %s24, %s31
      %p195 = scmp.eq.s32.totalorder %s194, 0
      %s197 = sadd.s32 %s196, 1
      %s198 = scalar_select %p195, %s196, %s197
      %p201 = pneg %p195
      %p202 = scmp.eq.s32.totalorder %s24, 2
      %p203 = por %p201, %p202
      %p204 = scmp.ne.s32.totalorder %s196, %s199
      %p205 = scmp.eq.s32.totalorder %s24, 0
      %p206 = por %p204, %p205
      %p207 = scmp.ne.s32.totalorder %s196, %s199
      %p208 = scmp.eq.s32.totalorder %s29, 2
      %p209 = por %p207, %p208
      %p210 = scmp.ne.s32.totalorder %s199, %s200
      %p211 = scmp.eq.s32.totalorder %s29, 0
      %p212 = por %p210, %p211
      %p213 = scmp.ne.s32.totalorder %s199, %s200
      %p214 = scmp.eq.s32.totalorder %s30, 2
      %p215 = por %p213, %p214
      %p217 = scmp.ne.s32.totalorder %s200, %s216
      %p218 = scmp.eq.s32.totalorder %s30, 0
      %p219 = por %p217, %p218
      %s220 = ssub.s32 %s24, %s31
      %p221 = scmp.eq.s32.totalorder %s220, 0
      %s223 = sadd.s32 %s222, 1
      %s224 = scalar_select %p221, %s222, %s223
      %p227 = pneg %p221
      %p228 = scmp.eq.s32.totalorder %s24, 2
      %p229 = por %p227, %p228
      %p230 = scmp.ne.s32.totalorder %s222, %s225
      %p231 = scmp.eq.s32.totalorder %s24, 0
      %p232 = por %p230, %p231
      %p233 = scmp.ne.s32.totalorder %s222, %s225
      %p234 = scmp.eq.s32.totalorder %s29, 2
      %p235 = por %p233, %p234
      %p236 = scmp.ne.s32.totalorder %s225, %s226
      %p237 = scmp.eq.s32.totalorder %s29, 0
      %p238 = por %p236, %p237
      %p239 = scmp.ne.s32.totalorder %s225, %s226
      %p240 = scmp.eq.s32.totalorder %s30, 2
      %p241 = por %p239, %p240
      %p243 = scmp.ne.s32.totalorder %s226, %s242
      %p244 = scmp.eq.s32.totalorder %s30, 0
      %p245 = por %p243, %p244
      %p246 = scmp.le.s32.totalorder 1, %s24
      %p247 = scmp.lt.s32.totalorder %s24, 4
      %p248 = pnand %p246, %p247
      %p249 = pneg %p248
      // Predicated region
      $region9: #{tpu_custom_call.1} parent=5 // pred_check
        _
      $region10: #{tpu_custom_call.1} parent=5 // pred_check_branch
        %251 = sbr.rel (%p248) target = $region12
      $region11: #{tpu_custom_call.1} parent=5 // pred_region
        %s252 = ssub.s32 %s24, 1
        // Predicated region
        $region13: #{tpu_custom_call.1} parent=11 // pred_check
          %p253 = pneg %p123
        $region14: #{tpu_custom_call.1} parent=11 // pred_check_branch
          %255 = sbr.rel (%p253) target = $region16
        $region15: #{tpu_custom_call.1} parent=11 // pred_region
          %s257 = ssub.s32 3072, 3072
          %258 = vsyncadd [#allocation8], %s257
          %s259 = sshll.u32 [#allocation7], 4
          %s260 = int_to_ptr.vmem [resolvable:$true] %s259
          %265 = dma.hbm_to_vmem [thread:$0]  %s3, 3072, %s260, [#allocation8], 64, 64, 4
        $region16: #{tpu_custom_call.1} parent=11 // pred_fallthru
          _
        // Predicated region
        $region17: #{tpu_custom_call.1} parent=11 // pred_check
          %p266 = pneg %p144
        $region18: #{tpu_custom_call.1} parent=11 // pred_check_branch
          %268 = sbr.rel (%p266) target = $region20
        $region19: #{tpu_custom_call.1} parent=11 // pred_region
          _
        $region20: #{tpu_custom_call.1} parent=11 // pred_fallthru
          _
        // Predicated region
        $region21: #{tpu_custom_call.1} parent=11 // pred_check
          %p269 = pneg %p165
        $region22: #{tpu_custom_call.1} parent=11 // pred_check_branch
          %271 = sbr.rel (%p269) target = $region24
        $region23: #{tpu_custom_call.1} parent=11 // pred_region
          %s273 = ssub.s32 1024, 1024
          %274 = vsyncadd [#allocation8], %s273
          %s275 = sshll.u32 [#allocation9], 4
          %s276 = int_to_ptr.vmem [resolvable:$true] %s275
          %281 = dma.hbm_to_vmem [thread:$0]  %s5, 1024, %s276, [#allocation8], 64, 64, 4
        $region24: #{tpu_custom_call.1} parent=11 // pred_fallthru
          _
        // Predicated region
        $region25: #{tpu_custom_call.1} parent=11 // pred_check
          %p282 = pneg %p186
        $region26: #{tpu_custom_call.1} parent=11 // pred_check_branch
          %284 = sbr.rel (%p282) target = $region28
        $region27: #{tpu_custom_call.1} parent=11 // pred_region
          _
        $region28: #{tpu_custom_call.1} parent=11 // pred_fallthru
          _
      $region12: #{tpu_custom_call.1} parent=5 // pred_fallthru
        _
      %p285 = scmp.lt.s32.totalorder %s24, 3
      // Predicated region
      $region29: #{tpu_custom_call.1} parent=5 // pred_check
        %p286 = pneg %p285
      $region30: #{tpu_custom_call.1} parent=5 // pred_check_branch
        %288 = sbr.rel (%p286) target = $region32
      $region31: #{tpu_custom_call.1} parent=5 // pred_region
        // Predicated region
        $region33: #{tpu_custom_call.1} parent=31 // pred_check
          %p289 = pneg %p44
        $region34: #{tpu_custom_call.1} parent=31 // pred_check_branch
          %291 = sbr.rel (%p289) target = $region36
        $region35: #{tpu_custom_call.1} parent=31 // pred_region
          %s292 = sand.u32 %s34, 1
          %s293 = scalar_lea.sflag [#allocation3], %s292
          %s294 = sand.u32 %s34, 1
          %s295 = smul.addr %s294, 64
          %s296 = scalar_lea.vmem [#allocation2], %s295
          %s297 = smul.u32 16, %s24
          %s299 = ssub.s32 1024, 1024
          %300 = vsyncadd %s293, %s299
          %s301 = smul.addr %s297, 64
          %s302 = scalar_lea.hbm %s0, %s301
          %s303 = sshll.u32 %s296, 4
          %s304 = int_to_ptr.vmem [resolvable:$true] %s303
          %309 = dma.hbm_to_vmem [thread:$0]  %s302, 1024, %s304, %s293, 64, 64, 4
        $region36: #{tpu_custom_call.1} parent=31 // pred_fallthru
          _
        // Predicated region
        $region37: #{tpu_custom_call.1} parent=31 // pred_check
          %p310 = pneg %p70
        $region38: #{tpu_custom_call.1} parent=31 // pred_check_branch
          %312 = sbr.rel (%p310) target = $region40
        $region39: #{tpu_custom_call.1} parent=31 // pred_region
          %s313 = sand.u32 %s24, 1
          %s314 = scalar_lea.sflag [#allocation5], %s313
          %s315 = sand.u32 %s60, 1
          %s316 = smul.addr %s315, 64
          %s317 = scalar_lea.vmem [#allocation4], %s316
          %s318 = smul.u32 16, %s24
          %s320 = ssub.s32 1024, 1024
          %321 = vsyncadd %s314, %s320
          %s322 = smul.addr %s318, 64
          %s323 = scalar_lea.hbm %s1, %s322
          %s324 = sshll.u32 %s317, 4
          %s325 = int_to_ptr.vmem [resolvable:$true] %s324
          %330 = dma.hbm_to_vmem [thread:$0]  %s323, 1024, %s325, %s314, 64, 64, 4
        $region40: #{tpu_custom_call.1} parent=31 // pred_fallthru
          _
        // Predicated region
        $region41: #{tpu_custom_call.1} parent=31 // pred_check
          %p331 = pneg %p96
        $region42: #{tpu_custom_call.1} parent=31 // pred_check_branch
          %333 = sbr.rel (%p331) target = $region44
        $region43: #{tpu_custom_call.1} parent=31 // pred_region
          %s334 = sand.u32 %s24, 1
          %s335 = scalar_lea.sflag [#allocation5], %s334
          %s336 = sand.u32 %s86, 1
          %s337 = smul.addr %s336, 64
          %s338 = scalar_lea.vmem [#allocation6], %s337
          %s339 = smul.u32 16, %s24
          %s341 = ssub.s32 1024, 1024
          %342 = vsyncadd %s335, %s341
          %s343 = smul.addr %s339, 64
          %s344 = scalar_lea.hbm %s2, %s343
          %s345 = sshll.u32 %s338, 4
          %s346 = int_to_ptr.vmem [resolvable:$true] %s345
          %351 = dma.hbm_to_vmem [thread:$0]  %s344, 1024, %s346, %s335, 64, 64, 4
        $region44: #{tpu_custom_call.1} parent=31 // pred_fallthru
          _
        // Predicated region
        $region45: #{tpu_custom_call.1} parent=31 // pred_check
          %p352 = pneg %p206
        $region46: #{tpu_custom_call.1} parent=31 // pred_check_branch
          %354 = sbr.rel (%p352) target = $region48
        $region47: #{tpu_custom_call.1} parent=31 // pred_region
          %s355 = sand.u32 %s196, 1
          %s356 = scalar_lea.sflag [#allocation11], %s355
          %s357 = sand.u32 %s196, 1
          %s358 = smul.addr %s357, 128
          %s359 = scalar_lea.vmem [#allocation10], %s358
          %s360 = smul.u32 16, %s24
          %s362 = ssub.s32 2048, 2048
          %363 = vsyncadd %s356, %s362
          %s364 = smul.addr %s360, 128
          %s365 = scalar_lea.hbm %s7, %s364
          %s366 = sshll.u32 %s359, 4
          %s367 = int_to_ptr.vmem [resolvable:$true] %s366
          %372 = dma.hbm_to_vmem [thread:$0]  %s365, 2048, %s367, %s356, 128, 128, 8
        $region48: #{tpu_custom_call.1} parent=31 // pred_fallthru
          _
      $region32: #{tpu_custom_call.1} parent=5 // pred_fallthru
        _
      %p373 = scmp.le.s32.totalorder 1, %s24
      %p374 = scmp.lt.s32.totalorder %s24, 4
      %p375 = pnand %p373, %p374
      %p376 = pneg %p375
      // Predicated region
      $region49: #{tpu_custom_call.1} parent=5 // pred_check
        _
      $region50: #{tpu_custom_call.1} parent=5 // pred_check_branch
        %378 = sbr.rel (%p375) target = $region52
      $region51: #{tpu_custom_call.1} parent=5 // pred_region
        %s379 = ssub.s32 %s24, 1
        %s380 = sand.u32 %s37, 1
        %s381 = scalar_lea.sflag [#allocation3], %s380
        %s382 = sand.u32 %s37, 1
        %s383 = smul.addr %s382, 64
        %s384 = scalar_lea.vmem [#allocation2], %s383
        // Predicated region
        $region53: #{tpu_custom_call.1} parent=51 // pred_check
          %p385 = pneg %p50
        $region54: #{tpu_custom_call.1} parent=51 // pred_check_branch
          %387 = sbr.rel (%p385) target = $region56
        $region55: #{tpu_custom_call.1} parent=51 // pred_region
          %388 = dma.done %s381, 1024
        $region56: #{tpu_custom_call.1} parent=51 // pred_fallthru
          _
        %s389 = sand.u32 %s29, 1
        %s390 = scalar_lea.sflag [#allocation5], %s389
        %s391 = sand.u32 %s63, 1
        %s392 = smul.addr %s391, 64
        %s393 = scalar_lea.vmem [#allocation4], %s392
        // Predicated region
        $region57: #{tpu_custom_call.1} parent=51 // pred_check
          %p394 = pneg %p76
        $region58: #{tpu_custom_call.1} parent=51 // pred_check_branch
          %396 = sbr.rel (%p394) target = $region60
        $region59: #{tpu_custom_call.1} parent=51 // pred_region
          %397 = dma.done %s390, 1024
        $region60: #{tpu_custom_call.1} parent=51 // pred_fallthru
          _
        %s398 = sand.u32 %s29, 1
        %s399 = scalar_lea.sflag [#allocation5], %s398
        %s400 = sand.u32 %s89, 1
        %s401 = smul.addr %s400, 64
        %s402 = scalar_lea.vmem [#allocation6], %s401
        // Predicated region
        $region61: #{tpu_custom_call.1} parent=51 // pred_check
          %p403 = pneg %p102
        $region62: #{tpu_custom_call.1} parent=51 // pred_check_branch
          %405 = sbr.rel (%p403) target = $region64
        $region63: #{tpu_custom_call.1} parent=51 // pred_region
          %406 = dma.done %s399, 1024
        $region64: #{tpu_custom_call.1} parent=51 // pred_fallthru
          _
        // Predicated region
        $region65: #{tpu_custom_call.1} parent=51 // pred_check
          %p407 = pneg %p123
        $region66: #{tpu_custom_call.1} parent=51 // pred_check_branch
          %409 = sbr.rel (%p407) target = $region68
        $region67: #{tpu_custom_call.1} parent=51 // pred_region
          %410 = dma.done [#allocation8], 3072
        $region68: #{tpu_custom_call.1} parent=51 // pred_fallthru
          _
        // Predicated region
        $region69: #{tpu_custom_call.1} parent=51 // pred_check
          %p411 = pneg %p165
        $region70: #{tpu_custom_call.1} parent=51 // pred_check_branch
          %413 = sbr.rel (%p411) target = $region72
        $region71: #{tpu_custom_call.1} parent=51 // pred_region
          %414 = dma.done [#allocation8], 1024
        $region72: #{tpu_custom_call.1} parent=51 // pred_fallthru
          _
        %s415 = sand.u32 %s199, 1
        %s416 = scalar_lea.sflag [#allocation11], %s415
        %s417 = sand.u32 %s199, 1
        %s418 = smul.addr %s417, 128
        %s419 = scalar_lea.vmem [#allocation10], %s418
        // Predicated region
        $region73: #{tpu_custom_call.1} parent=51 // pred_check
          %p420 = pneg %p212
        $region74: #{tpu_custom_call.1} parent=51 // pred_check_branch
          %422 = sbr.rel (%p420) target = $region76
        $region75: #{tpu_custom_call.1} parent=51 // pred_region
          %423 = dma.done %s416, 2048
        $region76: #{tpu_custom_call.1} parent=51 // pred_fallthru
          _
        %s424 = sand.u32 %s37, 1
        %s425 = scalar_lea.sflag [#allocation3], %s424
        %s426 = sand.u32 %s37, 1
        %s427 = smul.addr %s426, 64
        %s428 = scalar_lea.vmem [#allocation2], %s427
        %p429 = pneg %p50
        %p430 = pneg %p47
        %s431 = sand.u32 %s29, 1
        %s432 = scalar_lea.sflag [#allocation5], %s431
        %s433 = sand.u32 %s63, 1
        %s434 = smul.addr %s433, 64
        %s435 = scalar_lea.vmem [#allocation4], %s434
        %p436 = pneg %p76
        %p437 = pneg %p73
        %s438 = sand.u32 %s29, 1
        %s439 = scalar_lea.sflag [#allocation5], %s438
        %s440 = sand.u32 %s89, 1
        %s441 = smul.addr %s440, 64
        %s442 = scalar_lea.vmem [#allocation6], %s441
        %p443 = pneg %p102
        %p444 = pneg %p99
        %p445 = pneg %p123
        %p446 = pneg %p120
        %p447 = pneg %p144
        %p448 = pneg %p141
        %p449 = pneg %p165
        %p450 = pneg %p162
        %p451 = pneg %p186
        %p452 = pneg %p183
        %s453 = sand.u32 %s199, 1
        %s454 = scalar_lea.sflag [#allocation11], %s453
        %s455 = sand.u32 %s199, 1
        %s456 = smul.addr %s455, 128
        %s457 = scalar_lea.vmem [#allocation10], %s456
        %p458 = pneg %p212
        %p459 = pneg %p209
        %p460 = pneg %p238
        %p461 = pneg %p235
        %s462 = smul.u32 16, %s29
        %p463 = scmp.lt.s32.totalorder %s462, 47
        %s464 = scalar_select %p463, %s462, 47
        %s465 = smul.addr %s464, 8
        %s466 = scalar_lea.vmem %s8, %s465
        %s467 = smul.u32 16, %s29
        %s468 = smul.u32 16, %s29
        %s469 = smul.u32 16, %s29
        %s470 = smul.u32 16, %s29
        %s471 = smul.u32 16, %s29
        %p472 = scmp.lt.s32.totalorder %s471, 47
        %s473 = scalar_select %p472, %s471, 47
        %s474 = smul.addr %s473, 8
        %s475 = scalar_lea.vmem %s8, %s474
        %s476 = smul.u32 16, %s29
        %v478 = vld [vmem:[%s384] sm:$0xf]
        %v479 = vld [vmem:[%s384 + $0x4] sm:$0xf]
        %v480 = vld [vmem:[%s384 + $0x8] sm:$0xf]
        %v481 = vld [vmem:[%s384 + $0xc] sm:$0xf]
        %v482 = vld [vmem:[%s384 + $0x10] sm:$0xf]
        %v483 = vld [vmem:[%s384 + $0x14] sm:$0xf]
        %v484 = vld [vmem:[%s384 + $0x18] sm:$0xf]
        %v485 = vld [vmem:[%s384 + $0x1c] sm:$0xf]
        %v486 = vld [vmem:[%s384 + $0x20] sm:$0xf]
        %v487 = vld [vmem:[%s384 + $0x24] sm:$0xf]
        %v488 = vld [vmem:[%s384 + $0x28] sm:$0xf]
        %v489 = vld [vmem:[%s384 + $0x2c] sm:$0xf]
        %v490 = vld [vmem:[%s384 + $0x30] sm:$0xf]
        %v491 = vld [vmem:[%s384 + $0x34] sm:$0xf]
        %v492 = vld [vmem:[%s384 + $0x38] sm:$0xf]
        %v493 = vld [vmem:[%s384 + $0x3c] sm:$0xf]
        %v494 = vld [vmem:[#allocation7] sm:$0xf]
        %v495 = vld [vmem:[#allocation7 + $0x4] sm:$0xf]
        %v496 = vld [vmem:[#allocation7 + $0x8] sm:$0xf]
        %v497 = vld [vmem:[#allocation7 + $0xc] sm:$0xf]
        %v498 = vld [vmem:[#allocation7 + $0x10] sm:$0xf]
        %v499 = vld [vmem:[#allocation7 + $0x14] sm:$0xf]
        %v500 = vld [vmem:[#allocation7 + $0x18] sm:$0xf]
        %v501 = vld [vmem:[#allocation7 + $0x1c] sm:$0xf]
        %v502 = vld [vmem:[#allocation7 + $0x20] sm:$0xf]
        %v503 = vld [vmem:[#allocation7 + $0x24] sm:$0xf]
        %v504 = vld [vmem:[#allocation7 + $0x28] sm:$0xf]
        %v505 = vld [vmem:[#allocation7 + $0x2c] sm:$0xf]
        %v506 = vld [vmem:[#allocation7 + $0x30] sm:$0xf]
        %v507 = vld [vmem:[#allocation7 + $0x34] sm:$0xf]
        %v508 = vld [vmem:[#allocation7 + $0x38] sm:$0xf]
        %v509 = vld [vmem:[#allocation7 + $0x3c] sm:$0xf]
        %v510 = vld [vmem:[%s393] sm:$0xf]
        %v511 = vld [vmem:[%s393 + $0x4] sm:$0xf]
        %v512 = vld [vmem:[%s393 + $0x8] sm:$0xf]
        %v513 = vld [vmem:[%s393 + $0xc] sm:$0xf]
        %v514 = vld [vmem:[%s393 + $0x10] sm:$0xf]
        %v515 = vld [vmem:[%s393 + $0x14] sm:$0xf]
        %v516 = vld [vmem:[%s393 + $0x18] sm:$0xf]
        %v517 = vld [vmem:[%s393 + $0x1c] sm:$0xf]
        %v518 = vld [vmem:[%s393 + $0x20] sm:$0xf]
        %v519 = vld [vmem:[%s393 + $0x24] sm:$0xf]
        %v520 = vld [vmem:[%s393 + $0x28] sm:$0xf]
        %v521 = vld [vmem:[%s393 + $0x2c] sm:$0xf]
        %v522 = vld [vmem:[%s393 + $0x30] sm:$0xf]
        %v523 = vld [vmem:[%s393 + $0x34] sm:$0xf]
        %v524 = vld [vmem:[%s393 + $0x38] sm:$0xf]
        %v525 = vld [vmem:[%s393 + $0x3c] sm:$0xf]
        %s526 = scalar_lea.vmem [#allocation7], 64
        %v527 = vld [vmem:[%s526] sm:$0xf]
        %v528 = vld [vmem:[%s526 + $0x4] sm:$0xf]
        %v529 = vld [vmem:[%s526 + $0x8] sm:$0xf]
        %v530 = vld [vmem:[%s526 + $0xc] sm:$0xf]
        %v531 = vld [vmem:[%s526 + $0x10] sm:$0xf]
        %v532 = vld [vmem:[%s526 + $0x14] sm:$0xf]
        %v533 = vld [vmem:[%s526 + $0x18] sm:$0xf]
        %v534 = vld [vmem:[%s526 + $0x1c] sm:$0xf]
        %v535 = vld [vmem:[%s526 + $0x20] sm:$0xf]
        %v536 = vld [vmem:[%s526 + $0x24] sm:$0xf]
        %v537 = vld [vmem:[%s526 + $0x28] sm:$0xf]
        %v538 = vld [vmem:[%s526 + $0x2c] sm:$0xf]
        %v539 = vld [vmem:[%s526 + $0x30] sm:$0xf]
        %v540 = vld [vmem:[%s526 + $0x34] sm:$0xf]
        %v541 = vld [vmem:[%s526 + $0x38] sm:$0xf]
        %v542 = vld [vmem:[%s526 + $0x3c] sm:$0xf]
        %v559 = vunpack.c.l.b16 %v510
        %v560 = vunpack.c.l.b16 %v511
        %v561 = vunpack.c.l.b16 %v512
        %v562 = vunpack.c.l.b16 %v513
        %v563 = vunpack.c.l.b16 %v514
        %v564 = vunpack.c.l.b16 %v515
        %v565 = vunpack.c.l.b16 %v516
        %v566 = vunpack.c.l.b16 %v517
        %v567 = vunpack.c.l.b16 %v518
        %v568 = vunpack.c.l.b16 %v519
        %v569 = vunpack.c.l.b16 %v520
        %v570 = vunpack.c.l.b16 %v521
        %v571 = vunpack.c.l.b16 %v522
        %v572 = vunpack.c.l.b16 %v523
        %v573 = vunpack.c.l.b16 %v524
        %v574 = vunpack.c.l.b16 %v525
        %v575 = vpack.c.b16 %v560, %v559
        %v576 = vpack.c.b16 %v562, %v561
        %v577 = vpack.c.b16 %v564, %v563
        %v578 = vpack.c.b16 %v566, %v565
        %v579 = vpack.c.b16 %v568, %v567
        %v580 = vpack.c.b16 %v570, %v569
        %v581 = vpack.c.b16 %v572, %v571
        %v582 = vpack.c.b16 %v574, %v573
        %v607 = vunpack.c.l.b16 %v527
        %v608 = vunpack.c.l.b16 %v528
        %v609 = vunpack.c.l.b16 %v529
        %v610 = vunpack.c.l.b16 %v530
        %v611 = vunpack.c.l.b16 %v531
        %v612 = vunpack.c.l.b16 %v532
        %v613 = vunpack.c.l.b16 %v533
        %v614 = vunpack.c.l.b16 %v534
        %v615 = vunpack.c.l.b16 %v535
        %v616 = vunpack.c.l.b16 %v536
        %v617 = vunpack.c.l.b16 %v537
        %v618 = vunpack.c.l.b16 %v538
        %v619 = vunpack.c.l.b16 %v539
        %v620 = vunpack.c.l.b16 %v540
        %v621 = vunpack.c.l.b16 %v541
        %v622 = vunpack.c.l.b16 %v542
        %v623 = vpack.c.b16 %v608, %v607
        %v624 = vpack.c.b16 %v610, %v609
        %v625 = vpack.c.b16 %v612, %v611
        %v626 = vpack.c.b16 %v614, %v613
        %v627 = vpack.c.b16 %v616, %v615
        %v628 = vpack.c.b16 %v618, %v617
        %v629 = vpack.c.b16 %v620, %v619
        %v630 = vpack.c.b16 %v622, %v621
        %639 = vmatprep.subr.bf16.mxu0 0
        %640 = vmatpush1.bf16.msra.mxu0 %v630
        %641 = vmatprep.subr.bf16.mxu0 0
        %642 = vmatpush1.bf16.msra.mxu0 %v629
        %643 = vmatprep.subr.bf16.mxu0 0
        %644 = vmatpush1.bf16.msra.mxu0 %v628
        %645 = vmatprep.subr.bf16.mxu0 0
        %646 = vmatpush1.bf16.msra.mxu0 %v627
        %647 = vmatprep.subr.bf16.mxu0 0
        %648 = vmatpush1.bf16.msra.mxu0 %v626
        %649 = vmatprep.subr.bf16.mxu0 0
        %650 = vmatpush1.bf16.msra.mxu0 %v625
        %651 = vmatprep.subr.bf16.mxu0 0
        %652 = vmatpush1.bf16.msra.mxu0 %v624
        %653 = vmatprep.subr.bf16.mxu0 0
        %654 = vmatpush1.bf16.msra.mxu0 %v623
        %655 = vmatprep.subr.bf16.mxu0 0
        %656 = vmatpush2.bf16.msra.mxu0 0
        %657 = vmatprep.subr.bf16.mxu0 0
        %658 = vmatpush2.bf16.msra.mxu0 0
        %659 = vmatprep.subr.bf16.mxu0 0
        %660 = vmatpush2.bf16.msra.mxu0 0
        %661 = vmatprep.subr.bf16.mxu0 0
        %662 = vmatpush2.bf16.msra.mxu0 0
        %663 = vmatprep.subr.bf16.mxu0 0
        %664 = vmatpush2.bf16.msra.mxu0 0
        %665 = vmatprep.subr.bf16.mxu0 0
        %666 = vmatpush2.bf16.msra.mxu0 0
        %667 = vmatprep.subr.bf16.mxu0 0
        %668 = vmatpush2.bf16.msra.mxu0 0
        %669 = vmatprep.subr.bf16.mxu0 0
        %670 = vmatpush2.bf16.msra.mxu0 0
        %671 = vmatprep.mubr.bf16.mxu0 0
        %672 = vmatmul.mubr.bf16.gmra.mxu0 %v575
        %v673 = vpop.f32.mrf.mxu0
        %v674 = vadd.f32 0.0, %v673
        %v675 = vpop.f32.mrf.mxu0
        %v676 = vpop.f32.mrf.mxu0
        %v677 = vadd.f32 0.0, %v676
        %v678 = vpop.f32.mrf.mxu0
        %679 = vmatprep.mubr.bf16.mxu0 0
        %680 = vmatmul.mubr.bf16.gmra.mxu0 %v576
        %v681 = vpop.f32.mrf.mxu0
        %v682 = vadd.f32 0.0, %v681
        %v683 = vpop.f32.mrf.mxu0
        %v684 = vpop.f32.mrf.mxu0
        %v685 = vadd.f32 0.0, %v684
        %v686 = vpop.f32.mrf.mxu0
        %687 = vmatprep.mubr.bf16.mxu0 0
        %688 = vmatmul.mubr.bf16.gmra.mxu0 %v577
        %v689 = vpop.f32.mrf.mxu0
        %v690 = vadd.f32 0.0, %v689
        %v691 = vpop.f32.mrf.mxu0
        %v692 = vpop.f32.mrf.mxu0
        %v693 = vadd.f32 0.0, %v692
        %v694 = vpop.f32.mrf.mxu0
        %695 = vmatprep.mubr.bf16.mxu0 0
        %696 = vmatmul.mubr.bf16.gmra.mxu0 %v578
        %v697 = vpop.f32.mrf.mxu0
        %v698 = vadd.f32 0.0, %v697
        %v699 = vpop.f32.mrf.mxu0
        %v700 = vpop.f32.mrf.mxu0
        %v701 = vadd.f32 0.0, %v700
        %v702 = vpop.f32.mrf.mxu0
        %703 = vmatprep.mubr.bf16.mxu0 0
        %704 = vmatmul.mubr.bf16.gmra.mxu0 %v579
        %v705 = vpop.f32.mrf.mxu0
        %v706 = vadd.f32 0.0, %v705
        %v707 = vpop.f32.mrf.mxu0
        %v708 = vpop.f32.mrf.mxu0
        %v709 = vadd.f32 0.0, %v708
        %v710 = vpop.f32.mrf.mxu0
        %711 = vmatprep.mubr.bf16.mxu0 0
        %712 = vmatmul.mubr.bf16.gmra.mxu0 %v580
        %v713 = vpop.f32.mrf.mxu0
        %v714 = vadd.f32 0.0, %v713
        %v715 = vpop.f32.mrf.mxu0
        %v716 = vpop.f32.mrf.mxu0
        %v717 = vadd.f32 0.0, %v716
        %v718 = vpop.f32.mrf.mxu0
        %719 = vmatprep.mubr.bf16.mxu0 0
        %720 = vmatmul.mubr.bf16.gmra.mxu0 %v581
        %v721 = vpop.f32.mrf.mxu0
        %v722 = vadd.f32 0.0, %v721
        %v723 = vpop.f32.mrf.mxu0
        %v724 = vpop.f32.mrf.mxu0
        %v725 = vadd.f32 0.0, %v724
        %v726 = vpop.f32.mrf.mxu0
        %727 = vmatprep.mubr.bf16.mxu0 0
        %728 = vmatmul.mubr.bf16.gmra.mxu0 %v582
        %v729 = vpop.f32.mrf.mxu0
        %v730 = vadd.f32 0.0, %v729
        %v731 = vpop.f32.mrf.mxu0
        %v732 = vpop.f32.mrf.mxu0
        %v733 = vadd.f32 0.0, %v732
        %v734 = vpop.f32.mrf.mxu0
        %735 = vdwg.mxu0
        %v752 = vunpack.c.l.b16 %v478
        %v753 = vunpack.c.l.b16 %v479
        %v754 = vunpack.c.l.b16 %v480
        %v755 = vunpack.c.l.b16 %v481
        %v756 = vunpack.c.l.b16 %v482
        %v757 = vunpack.c.l.b16 %v483
        %v758 = vunpack.c.l.b16 %v484
        %v759 = vunpack.c.l.b16 %v485
        %v760 = vunpack.c.l.b16 %v486
        %v761 = vunpack.c.l.b16 %v487
        %v762 = vunpack.c.l.b16 %v488
        %v763 = vunpack.c.l.b16 %v489
        %v764 = vunpack.c.l.b16 %v490
        %v765 = vunpack.c.l.b16 %v491
        %v766 = vunpack.c.l.b16 %v492
        %v767 = vunpack.c.l.b16 %v493
        %v768 = vpack.c.b16 %v753, %v752
        %v769 = vpack.c.b16 %v755, %v754
        %v770 = vpack.c.b16 %v757, %v756
        %v771 = vpack.c.b16 %v759, %v758
        %v772 = vpack.c.b16 %v761, %v760
        %v773 = vpack.c.b16 %v763, %v762
        %v774 = vpack.c.b16 %v765, %v764
        %v775 = vpack.c.b16 %v767, %v766
        %v800 = vunpack.c.l.b16 %v494
        %v801 = vunpack.c.l.b16 %v495
        %v802 = vunpack.c.l.b16 %v496
        %v803 = vunpack.c.l.b16 %v497
        %v804 = vunpack.c.l.b16 %v498
        %v805 = vunpack.c.l.b16 %v499
        %v806 = vunpack.c.l.b16 %v500
        %v807 = vunpack.c.l.b16 %v501
        %v808 = vunpack.c.l.b16 %v502
        %v809 = vunpack.c.l.b16 %v503
        %v810 = vunpack.c.l.b16 %v504
        %v811 = vunpack.c.l.b16 %v505
        %v812 = vunpack.c.l.b16 %v506
        %v813 = vunpack.c.l.b16 %v507
        %v814 = vunpack.c.l.b16 %v508
        %v815 = vunpack.c.l.b16 %v509
        %v816 = vpack.c.b16 %v801, %v800
        %v817 = vpack.c.b16 %v803, %v802
        %v818 = vpack.c.b16 %v805, %v804
        %v819 = vpack.c.b16 %v807, %v806
        %v820 = vpack.c.b16 %v809, %v808
        %v821 = vpack.c.b16 %v811, %v810
        %v822 = vpack.c.b16 %v813, %v812
        %v823 = vpack.c.b16 %v815, %v814
        %832 = vmatprep.subr.bf16.mxu0 0
        %833 = vmatpush1.bf16.msra.mxu0 %v823
        %834 = vmatprep.subr.bf16.mxu0 0
        %835 = vmatpush1.bf16.msra.mxu0 %v822
        %836 = vmatprep.subr.bf16.mxu0 0
        %837 = vmatpush1.bf16.msra.mxu0 %v821
        %838 = vmatprep.subr.bf16.mxu0 0
        %839 = vmatpush1.bf16.msra.mxu0 %v820
        %840 = vmatprep.subr.bf16.mxu0 0
        %841 = vmatpush1.bf16.msra.mxu0 %v819
        %842 = vmatprep.subr.bf16.mxu0 0
        %843 = vmatpush1.bf16.msra.mxu0 %v818
        %844 = vmatprep.subr.bf16.mxu0 0
        %845 = vmatpush1.bf16.msra.mxu0 %v817
        %846 = vmatprep.subr.bf16.mxu0 0
        %847 = vmatpush1.bf16.msra.mxu0 %v816
        %848 = vmatprep.subr.bf16.mxu0 0
        %849 = vmatpush2.bf16.msra.mxu0 0
        %850 = vmatprep.subr.bf16.mxu0 0
        %851 = vmatpush2.bf16.msra.mxu0 0
        %852 = vmatprep.subr.bf16.mxu0 0
        %853 = vmatpush2.bf16.msra.mxu0 0
        %854 = vmatprep.subr.bf16.mxu0 0
        %855 = vmatpush2.bf16.msra.mxu0 0
        %856 = vmatprep.subr.bf16.mxu0 0
        %857 = vmatpush2.bf16.msra.mxu0 0
        %858 = vmatprep.subr.bf16.mxu0 0
        %859 = vmatpush2.bf16.msra.mxu0 0
        %860 = vmatprep.subr.bf16.mxu0 0
        %861 = vmatpush2.bf16.msra.mxu0 0
        %862 = vmatprep.subr.bf16.mxu0 0
        %863 = vmatpush2.bf16.msra.mxu0 0
        %864 = vmatprep.mubr.bf16.mxu0 0
        %865 = vmatmul.mubr.bf16.gmra.mxu0 %v768
        %v866 = vpop.f32.mrf.mxu0
        %v867 = vadd.f32 %v674, %v866
        %v868 = vpop.f32.mrf.mxu0
        %v869 = vpop.f32.mrf.mxu0
        %v870 = vadd.f32 %v677, %v869
        %v871 = vpop.f32.mrf.mxu0
        %872 = vmatprep.mubr.bf16.mxu0 0
        %873 = vmatmul.mubr.bf16.gmra.mxu0 %v769
        %v874 = vpop.f32.mrf.mxu0
        %v875 = vadd.f32 %v682, %v874
        %v876 = vpop.f32.mrf.mxu0
        %v877 = vpop.f32.mrf.mxu0
        %v878 = vadd.f32 %v685, %v877
        %v879 = vpop.f32.mrf.mxu0
        %880 = vmatprep.mubr.bf16.mxu0 0
        %881 = vmatmul.mubr.bf16.gmra.mxu0 %v770
        %v882 = vpop.f32.mrf.mxu0
        %v883 = vadd.f32 %v690, %v882
        %v884 = vpop.f32.mrf.mxu0
        %v885 = vpop.f32.mrf.mxu0
        %v886 = vadd.f32 %v693, %v885
        %v887 = vpop.f32.mrf.mxu0
        %888 = vmatprep.mubr.bf16.mxu0 0
        %889 = vmatmul.mubr.bf16.gmra.mxu0 %v771
        %v890 = vpop.f32.mrf.mxu0
        %v891 = vadd.f32 %v698, %v890
        %v892 = vpop.f32.mrf.mxu0
        %v893 = vpop.f32.mrf.mxu0
        %v894 = vadd.f32 %v701, %v893
        %v895 = vpop.f32.mrf.mxu0
        %896 = vmatprep.mubr.bf16.mxu0 0
        %897 = vmatmul.mubr.bf16.gmra.mxu0 %v772
        %v898 = vpop.f32.mrf.mxu0
        %v899 = vadd.f32 %v706, %v898
        %v900 = vpop.f32.mrf.mxu0
        %v901 = vpop.f32.mrf.mxu0
        %v902 = vadd.f32 %v709, %v901
        %v903 = vpop.f32.mrf.mxu0
        %904 = vmatprep.mubr.bf16.mxu0 0
        %905 = vmatmul.mubr.bf16.gmra.mxu0 %v773
        %v906 = vpop.f32.mrf.mxu0
        %v907 = vadd.f32 %v714, %v906
        %v908 = vpop.f32.mrf.mxu0
        %v909 = vpop.f32.mrf.mxu0
        %v910 = vadd.f32 %v717, %v909
        %v911 = vpop.f32.mrf.mxu0
        %912 = vmatprep.mubr.bf16.mxu0 0
        %913 = vmatmul.mubr.bf16.gmra.mxu0 %v774
        %v914 = vpop.f32.mrf.mxu0
        %v915 = vadd.f32 %v722, %v914
        %v916 = vpop.f32.mrf.mxu0
        %v917 = vpop.f32.mrf.mxu0
        %v918 = vadd.f32 %v725, %v917
        %v919 = vpop.f32.mrf.mxu0
        %920 = vmatprep.mubr.bf16.mxu0 0
        %921 = vmatmul.mubr.bf16.gmra.mxu0 %v775
        %v922 = vpop.f32.mrf.mxu0
        %v923 = vadd.f32 %v730, %v922
        %v924 = vpop.f32.mrf.mxu0
        %v925 = vpop.f32.mrf.mxu0
        %v926 = vadd.f32 %v733, %v925
        %v927 = vpop.f32.mrf.mxu0
        %928 = vdwg.mxu0
        %v929 = vld [vmem:[%s402] sm:$0xf]
        %v930 = vld [vmem:[%s402 + $0x4] sm:$0xf]
        %v931 = vld [vmem:[%s402 + $0x8] sm:$0xf]
        %v932 = vld [vmem:[%s402 + $0xc] sm:$0xf]
        %v933 = vld [vmem:[%s402 + $0x10] sm:$0xf]
        %v934 = vld [vmem:[%s402 + $0x14] sm:$0xf]
        %v935 = vld [vmem:[%s402 + $0x18] sm:$0xf]
        %v936 = vld [vmem:[%s402 + $0x1c] sm:$0xf]
        %v937 = vld [vmem:[%s402 + $0x20] sm:$0xf]
        %v938 = vld [vmem:[%s402 + $0x24] sm:$0xf]
        %v939 = vld [vmem:[%s402 + $0x28] sm:$0xf]
        %v940 = vld [vmem:[%s402 + $0x2c] sm:$0xf]
        %v941 = vld [vmem:[%s402 + $0x30] sm:$0xf]
        %v942 = vld [vmem:[%s402 + $0x34] sm:$0xf]
        %v943 = vld [vmem:[%s402 + $0x38] sm:$0xf]
        %v944 = vld [vmem:[%s402 + $0x3c] sm:$0xf]
        %s945 = scalar_lea.vmem [#allocation7], 128
        %v946 = vld [vmem:[%s945] sm:$0xf]
        %v947 = vld [vmem:[%s945 + $0x4] sm:$0xf]
        %v948 = vld [vmem:[%s945 + $0x8] sm:$0xf]
        %v949 = vld [vmem:[%s945 + $0xc] sm:$0xf]
        %v950 = vld [vmem:[%s945 + $0x10] sm:$0xf]
        %v951 = vld [vmem:[%s945 + $0x14] sm:$0xf]
        %v952 = vld [vmem:[%s945 + $0x18] sm:$0xf]
        %v953 = vld [vmem:[%s945 + $0x1c] sm:$0xf]
        %v954 = vld [vmem:[%s945 + $0x20] sm:$0xf]
        %v955 = vld [vmem:[%s945 + $0x24] sm:$0xf]
        %v956 = vld [vmem:[%s945 + $0x28] sm:$0xf]
        %v957 = vld [vmem:[%s945 + $0x2c] sm:$0xf]
        %v958 = vld [vmem:[%s945 + $0x30] sm:$0xf]
        %v959 = vld [vmem:[%s945 + $0x34] sm:$0xf]
        %v960 = vld [vmem:[%s945 + $0x38] sm:$0xf]
        %v961 = vld [vmem:[%s945 + $0x3c] sm:$0xf]
        %v978 = vunpack.c.l.b16 %v929
        %v979 = vunpack.c.l.b16 %v930
        %v980 = vunpack.c.l.b16 %v931
        %v981 = vunpack.c.l.b16 %v932
        %v982 = vunpack.c.l.b16 %v933
        %v983 = vunpack.c.l.b16 %v934
        %v984 = vunpack.c.l.b16 %v935
        %v985 = vunpack.c.l.b16 %v936
        %v986 = vunpack.c.l.b16 %v937
        %v987 = vunpack.c.l.b16 %v938
        %v988 = vunpack.c.l.b16 %v939
        %v989 = vunpack.c.l.b16 %v940
        %v990 = vunpack.c.l.b16 %v941
        %v991 = vunpack.c.l.b16 %v942
        %v992 = vunpack.c.l.b16 %v943
        %v993 = vunpack.c.l.b16 %v944
        %v994 = vpack.c.b16 %v979, %v978
        %v995 = vpack.c.b16 %v981, %v980
        %v996 = vpack.c.b16 %v983, %v982
        %v997 = vpack.c.b16 %v985, %v984
        %v998 = vpack.c.b16 %v987, %v986
        %v999 = vpack.c.b16 %v989, %v988
        %v1000 = vpack.c.b16 %v991, %v990
        %v1001 = vpack.c.b16 %v993, %v992
        %v1026 = vunpack.c.l.b16 %v946
        %v1027 = vunpack.c.l.b16 %v947
        %v1028 = vunpack.c.l.b16 %v948
        %v1029 = vunpack.c.l.b16 %v949
        %v1030 = vunpack.c.l.b16 %v950
        %v1031 = vunpack.c.l.b16 %v951
        %v1032 = vunpack.c.l.b16 %v952
        %v1033 = vunpack.c.l.b16 %v953
        %v1034 = vunpack.c.l.b16 %v954
        %v1035 = vunpack.c.l.b16 %v955
        %v1036 = vunpack.c.l.b16 %v956
        %v1037 = vunpack.c.l.b16 %v957
        %v1038 = vunpack.c.l.b16 %v958
        %v1039 = vunpack.c.l.b16 %v959
        %v1040 = vunpack.c.l.b16 %v960
        %v1041 = vunpack.c.l.b16 %v961
        %v1042 = vpack.c.b16 %v1027, %v1026
        %v1043 = vpack.c.b16 %v1029, %v1028
        %v1044 = vpack.c.b16 %v1031, %v1030
        %v1045 = vpack.c.b16 %v1033, %v1032
        %v1046 = vpack.c.b16 %v1035, %v1034
        %v1047 = vpack.c.b16 %v1037, %v1036
        %v1048 = vpack.c.b16 %v1039, %v1038
        %v1049 = vpack.c.b16 %v1041, %v1040
        %1058 = vmatprep.subr.bf16.mxu0 0
        %1059 = vmatpush1.bf16.msra.mxu0 %v1049
        %1060 = vmatprep.subr.bf16.mxu0 0
        %1061 = vmatpush1.bf16.msra.mxu0 %v1048
        %1062 = vmatprep.subr.bf16.mxu0 0
        %1063 = vmatpush1.bf16.msra.mxu0 %v1047
        %1064 = vmatprep.subr.bf16.mxu0 0
        %1065 = vmatpush1.bf16.msra.mxu0 %v1046
        %1066 = vmatprep.subr.bf16.mxu0 0
        %1067 = vmatpush1.bf16.msra.mxu0 %v1045
        %1068 = vmatprep.subr.bf16.mxu0 0
        %1069 = vmatpush1.bf16.msra.mxu0 %v1044
        %1070 = vmatprep.subr.bf16.mxu0 0
        %1071 = vmatpush1.bf16.msra.mxu0 %v1043
        %1072 = vmatprep.subr.bf16.mxu0 0
        %1073 = vmatpush1.bf16.msra.mxu0 %v1042
        %1074 = vmatprep.subr.bf16.mxu0 0
        %1075 = vmatpush2.bf16.msra.mxu0 0
        %1076 = vmatprep.subr.bf16.mxu0 0
        %1077 = vmatpush2.bf16.msra.mxu0 0
        %1078 = vmatprep.subr.bf16.mxu0 0
        %1079 = vmatpush2.bf16.msra.mxu0 0
        %1080 = vmatprep.subr.bf16.mxu0 0
        %1081 = vmatpush2.bf16.msra.mxu0 0
        %1082 = vmatprep.subr.bf16.mxu0 0
        %1083 = vmatpush2.bf16.msra.mxu0 0
        %1084 = vmatprep.subr.bf16.mxu0 0
        %1085 = vmatpush2.bf16.msra.mxu0 0
        %1086 = vmatprep.subr.bf16.mxu0 0
        %1087 = vmatpush2.bf16.msra.mxu0 0
        %1088 = vmatprep.subr.bf16.mxu0 0
        %1089 = vmatpush2.bf16.msra.mxu0 0
        %1090 = vmatprep.mubr.bf16.mxu0 0
        %1091 = vmatmul.mubr.bf16.gmra.mxu0 %v994
        %v1092 = vpop.f32.mrf.mxu0
        %v1093 = vadd.f32 0.0, %v1092
        %v1094 = vpop.f32.mrf.mxu0
        %v1095 = vpop.f32.mrf.mxu0
        %v1096 = vadd.f32 0.0, %v1095
        %v1097 = vpop.f32.mrf.mxu0
        %1098 = vmatprep.mubr.bf16.mxu0 0
        %1099 = vmatmul.mubr.bf16.gmra.mxu0 %v995
        %v1100 = vpop.f32.mrf.mxu0
        %v1101 = vadd.f32 0.0, %v1100
        %v1102 = vpop.f32.mrf.mxu0
        %v1103 = vpop.f32.mrf.mxu0
        %v1104 = vadd.f32 0.0, %v1103
        %v1105 = vpop.f32.mrf.mxu0
        %1106 = vmatprep.mubr.bf16.mxu0 0
        %1107 = vmatmul.mubr.bf16.gmra.mxu0 %v996
        %v1108 = vpop.f32.mrf.mxu0
        %v1109 = vadd.f32 0.0, %v1108
        %v1110 = vpop.f32.mrf.mxu0
        %v1111 = vpop.f32.mrf.mxu0
        %v1112 = vadd.f32 0.0, %v1111
        %v1113 = vpop.f32.mrf.mxu0
        %1114 = vmatprep.mubr.bf16.mxu0 0
        %1115 = vmatmul.mubr.bf16.gmra.mxu0 %v997
        %v1116 = vpop.f32.mrf.mxu0
        %v1117 = vadd.f32 0.0, %v1116
        %v1118 = vpop.f32.mrf.mxu0
        %v1119 = vpop.f32.mrf.mxu0
        %v1120 = vadd.f32 0.0, %v1119
        %v1121 = vpop.f32.mrf.mxu0
        %1122 = vmatprep.mubr.bf16.mxu0 0
        %1123 = vmatmul.mubr.bf16.gmra.mxu0 %v998
        %v1124 = vpop.f32.mrf.mxu0
        %v1125 = vadd.f32 0.0, %v1124
        %v1126 = vpop.f32.mrf.mxu0
        %v1127 = vpop.f32.mrf.mxu0
        %v1128 = vadd.f32 0.0, %v1127
        %v1129 = vpop.f32.mrf.mxu0
        %1130 = vmatprep.mubr.bf16.mxu0 0
        %1131 = vmatmul.mubr.bf16.gmra.mxu0 %v999
        %v1132 = vpop.f32.mrf.mxu0
        %v1133 = vadd.f32 0.0, %v1132
        %v1134 = vpop.f32.mrf.mxu0
        %v1135 = vpop.f32.mrf.mxu0
        %v1136 = vadd.f32 0.0, %v1135
        %v1137 = vpop.f32.mrf.mxu0
        %1138 = vmatprep.mubr.bf16.mxu0 0
        %1139 = vmatmul.mubr.bf16.gmra.mxu0 %v1000
        %v1140 = vpop.f32.mrf.mxu0
        %v1141 = vadd.f32 0.0, %v1140
        %v1142 = vpop.f32.mrf.mxu0
        %v1143 = vpop.f32.mrf.mxu0
        %v1144 = vadd.f32 0.0, %v1143
        %v1145 = vpop.f32.mrf.mxu0
        %1146 = vmatprep.mubr.bf16.mxu0 0
        %1147 = vmatmul.mubr.bf16.gmra.mxu0 %v1001
        %v1148 = vpop.f32.mrf.mxu0
        %v1149 = vadd.f32 0.0, %v1148
        %v1150 = vpop.f32.mrf.mxu0
        %v1151 = vpop.f32.mrf.mxu0
        %v1152 = vadd.f32 0.0, %v1151
        %v1153 = vpop.f32.mrf.mxu0
        %1154 = vdwg.mxu0
        %v1155 = vadd.f32 %v867, %v1093
        %v1156 = vadd.f32 %v870, %v1096
        %v1157 = vadd.f32 %v875, %v1101
        %v1158 = vadd.f32 %v878, %v1104
        %v1159 = vadd.f32 %v883, %v1109
        %v1160 = vadd.f32 %v886, %v1112
        %v1161 = vadd.f32 %v891, %v1117
        %v1162 = vadd.f32 %v894, %v1120
        %v1163 = vadd.f32 %v899, %v1125
        %v1164 = vadd.f32 %v902, %v1128
        %v1165 = vadd.f32 %v907, %v1133
        %v1166 = vadd.f32 %v910, %v1136
        %v1167 = vadd.f32 %v915, %v1141
        %v1168 = vadd.f32 %v918, %v1144
        %v1169 = vadd.f32 %v923, %v1149
        %v1170 = vadd.f32 %v926, %v1152
        %v1171 = vld [vmem:[%s4] sm:$0x1]
        %v1173 = vlaneseq
        %v1174 = vshrl.u32 %v1173, 7
        %v1175 = vsub.s32 0, %v1174
        %v1176 = vrot.slane %v1171, %v1175
        %v1178 = vadd.f32 %v1155, %v1176
        %v1179 = vadd.f32 %v1156, %v1176
        %v1180 = vadd.f32 %v1157, %v1176
        %v1181 = vadd.f32 %v1158, %v1176
        %v1182 = vadd.f32 %v1159, %v1176
        %v1183 = vadd.f32 %v1160, %v1176
        %v1184 = vadd.f32 %v1161, %v1176
        %v1185 = vadd.f32 %v1162, %v1176
        %v1186 = vadd.f32 %v1163, %v1176
        %v1187 = vadd.f32 %v1164, %v1176
        %v1188 = vadd.f32 %v1165, %v1176
        %v1189 = vadd.f32 %v1166, %v1176
        %v1190 = vadd.f32 %v1167, %v1176
        %v1191 = vadd.f32 %v1168, %v1176
        %v1192 = vadd.f32 %v1169, %v1176
        %v1193 = vadd.f32 %v1170, %v1176
        %v1194 = vmax.f32 %v1178, 0.0
        %v1195 = vmax.f32 %v1179, 0.0
        %v1196 = vmax.f32 %v1180, 0.0
        %v1197 = vmax.f32 %v1181, 0.0
        %v1198 = vmax.f32 %v1182, 0.0
        %v1199 = vmax.f32 %v1183, 0.0
        %v1200 = vmax.f32 %v1184, 0.0
        %v1201 = vmax.f32 %v1185, 0.0
        %v1202 = vmax.f32 %v1186, 0.0
        %v1203 = vmax.f32 %v1187, 0.0
        %v1204 = vmax.f32 %v1188, 0.0
        %v1205 = vmax.f32 %v1189, 0.0
        %v1206 = vmax.f32 %v1190, 0.0
        %v1207 = vmax.f32 %v1191, 0.0
        %v1208 = vmax.f32 %v1192, 0.0
        %v1209 = vmax.f32 %v1193, 0.0
        %v1210 = vpack.c.bf16 %v1195, %v1194
        %v1211 = vpack.c.bf16 %v1197, %v1196
        %v1212 = vpack.c.bf16 %v1199, %v1198
        %v1213 = vpack.c.bf16 %v1201, %v1200
        %v1214 = vpack.c.bf16 %v1203, %v1202
        %v1215 = vpack.c.bf16 %v1205, %v1204
        %v1216 = vpack.c.bf16 %v1207, %v1206
        %v1217 = vpack.c.bf16 %v1209, %v1208
        %v1218 = vld [vmem:[#allocation9] sm:$0xf]
        %v1219 = vld [vmem:[#allocation9 + $0x4] sm:$0xf]
        %v1220 = vld [vmem:[#allocation9 + $0x8] sm:$0xf]
        %v1221 = vld [vmem:[#allocation9 + $0xc] sm:$0xf]
        %v1222 = vld [vmem:[#allocation9 + $0x10] sm:$0xf]
        %v1223 = vld [vmem:[#allocation9 + $0x14] sm:$0xf]
        %v1224 = vld [vmem:[#allocation9 + $0x18] sm:$0xf]
        %v1225 = vld [vmem:[#allocation9 + $0x1c] sm:$0xf]
        %v1226 = vld [vmem:[#allocation9 + $0x20] sm:$0xf]
        %v1227 = vld [vmem:[#allocation9 + $0x24] sm:$0xf]
        %v1228 = vld [vmem:[#allocation9 + $0x28] sm:$0xf]
        %v1229 = vld [vmem:[#allocation9 + $0x2c] sm:$0xf]
        %v1230 = vld [vmem:[#allocation9 + $0x30] sm:$0xf]
        %v1231 = vld [vmem:[#allocation9 + $0x34] sm:$0xf]
        %v1232 = vld [vmem:[#allocation9 + $0x38] sm:$0xf]
        %v1233 = vld [vmem:[#allocation9 + $0x3c] sm:$0xf]
        %v1234 = vld [vmem:[%s6] sm:$0x1]
        %v1236 = vlaneseq
        %v1237 = vshrl.u32 %v1236, 7
        %v1238 = vsub.s32 0, %v1237
        %v1239 = vrot.slane %v1234, %v1238
        %v1257 = vunpack.c.l.b16 %v1218
        %v1258 = vunpack.c.l.b16 %v1219
        %v1259 = vunpack.c.l.b16 %v1220
        %v1260 = vunpack.c.l.b16 %v1221
        %v1261 = vunpack.c.l.b16 %v1222
        %v1262 = vunpack.c.l.b16 %v1223
        %v1263 = vunpack.c.l.b16 %v1224
        %v1264 = vunpack.c.l.b16 %v1225
        %v1265 = vunpack.c.l.b16 %v1226
        %v1266 = vunpack.c.l.b16 %v1227
        %v1267 = vunpack.c.l.b16 %v1228
        %v1268 = vunpack.c.l.b16 %v1229
        %v1269 = vunpack.c.l.b16 %v1230
        %v1270 = vunpack.c.l.b16 %v1231
        %v1271 = vunpack.c.l.b16 %v1232
        %v1272 = vunpack.c.l.b16 %v1233
        %v1273 = vpack.c.b16 %v1258, %v1257
        %v1274 = vpack.c.b16 %v1260, %v1259
        %v1275 = vpack.c.b16 %v1262, %v1261
        %v1276 = vpack.c.b16 %v1264, %v1263
        %v1277 = vpack.c.b16 %v1266, %v1265
        %v1278 = vpack.c.b16 %v1268, %v1267
        %v1279 = vpack.c.b16 %v1270, %v1269
        %v1280 = vpack.c.b16 %v1272, %v1271
        %1289 = vmatprep.subr.bf16.mxu0 0
        %1290 = vmatpush1.bf16.msra.mxu0 %v1280
        %1291 = vmatprep.subr.bf16.mxu0 0
        %1292 = vmatpush1.bf16.msra.mxu0 %v1279
        %1293 = vmatprep.subr.bf16.mxu0 0
        %1294 = vmatpush1.bf16.msra.mxu0 %v1278
        %1295 = vmatprep.subr.bf16.mxu0 0
        %1296 = vmatpush1.bf16.msra.mxu0 %v1277
        %1297 = vmatprep.subr.bf16.mxu0 0
        %1298 = vmatpush1.bf16.msra.mxu0 %v1276
        %1299 = vmatprep.subr.bf16.mxu0 0
        %1300 = vmatpush1.bf16.msra.mxu0 %v1275
        %1301 = vmatprep.subr.bf16.mxu0 0
        %1302 = vmatpush1.bf16.msra.mxu0 %v1274
        %1303 = vmatprep.subr.bf16.mxu0 0
        %1304 = vmatpush1.bf16.msra.mxu0 %v1273
        %1305 = vmatprep.subr.bf16.mxu0 0
        %1306 = vmatpush2.bf16.msra.mxu0 0
        %1307 = vmatprep.subr.bf16.mxu0 0
        %1308 = vmatpush2.bf16.msra.mxu0 0
        %1309 = vmatprep.subr.bf16.mxu0 0
        %1310 = vmatpush2.bf16.msra.mxu0 0
        %1311 = vmatprep.subr.bf16.mxu0 0
        %1312 = vmatpush2.bf16.msra.mxu0 0
        %1313 = vmatprep.subr.bf16.mxu0 0
        %1314 = vmatpush2.bf16.msra.mxu0 0
        %1315 = vmatprep.subr.bf16.mxu0 0
        %1316 = vmatpush2.bf16.msra.mxu0 0
        %1317 = vmatprep.subr.bf16.mxu0 0
        %1318 = vmatpush2.bf16.msra.mxu0 0
        %1319 = vmatprep.subr.bf16.mxu0 0
        %1320 = vmatpush2.bf16.msra.mxu0 0
        %1321 = vmatprep.mubr.bf16.mxu0 0
        %1322 = vmatmul.mubr.bf16.gmra.mxu0 %v1210
        %v1323 = vpop.f32.mrf.mxu0
        %v1324 = vadd.f32 %v1239, %v1323
        %v1325 = vpop.f32.mrf.mxu0
        %v1326 = vpop.f32.mrf.mxu0
        %v1327 = vadd.f32 %v1239, %v1326
        %v1328 = vpop.f32.mrf.mxu0
        %1329 = vmatprep.mubr.bf16.mxu0 0
        %1330 = vmatmul.mubr.bf16.gmra.mxu0 %v1211
        %v1331 = vpop.f32.mrf.mxu0
        %v1332 = vadd.f32 %v1239, %v1331
        %v1333 = vpop.f32.mrf.mxu0
        %v1334 = vpop.f32.mrf.mxu0
        %v1335 = vadd.f32 %v1239, %v1334
        %v1336 = vpop.f32.mrf.mxu0
        %1337 = vmatprep.mubr.bf16.mxu0 0
        %1338 = vmatmul.mubr.bf16.gmra.mxu0 %v1212
        %v1339 = vpop.f32.mrf.mxu0
        %v1340 = vadd.f32 %v1239, %v1339
        %v1341 = vpop.f32.mrf.mxu0
        %v1342 = vpop.f32.mrf.mxu0
        %v1343 = vadd.f32 %v1239, %v1342
        %v1344 = vpop.f32.mrf.mxu0
        %1345 = vmatprep.mubr.bf16.mxu0 0
        %1346 = vmatmul.mubr.bf16.gmra.mxu0 %v1213
        %v1347 = vpop.f32.mrf.mxu0
        %v1348 = vadd.f32 %v1239, %v1347
        %v1349 = vpop.f32.mrf.mxu0
        %v1350 = vpop.f32.mrf.mxu0
        %v1351 = vadd.f32 %v1239, %v1350
        %v1352 = vpop.f32.mrf.mxu0
        %1353 = vmatprep.mubr.bf16.mxu0 0
        %1354 = vmatmul.mubr.bf16.gmra.mxu0 %v1214
        %v1355 = vpop.f32.mrf.mxu0
        %v1356 = vadd.f32 %v1239, %v1355
        %v1357 = vpop.f32.mrf.mxu0
        %v1358 = vpop.f32.mrf.mxu0
        %v1359 = vadd.f32 %v1239, %v1358
        %v1360 = vpop.f32.mrf.mxu0
        %1361 = vmatprep.mubr.bf16.mxu0 0
        %1362 = vmatmul.mubr.bf16.gmra.mxu0 %v1215
        %v1363 = vpop.f32.mrf.mxu0
        %v1364 = vadd.f32 %v1239, %v1363
        %v1365 = vpop.f32.mrf.mxu0
        %v1366 = vpop.f32.mrf.mxu0
        %v1367 = vadd.f32 %v1239, %v1366
        %v1368 = vpop.f32.mrf.mxu0
        %1369 = vmatprep.mubr.bf16.mxu0 0
        %1370 = vmatmul.mubr.bf16.gmra.mxu0 %v1216
        %v1371 = vpop.f32.mrf.mxu0
        %v1372 = vadd.f32 %v1239, %v1371
        %v1373 = vpop.f32.mrf.mxu0
        %v1374 = vpop.f32.mrf.mxu0
        %v1375 = vadd.f32 %v1239, %v1374
        %v1376 = vpop.f32.mrf.mxu0
        %1377 = vmatprep.mubr.bf16.mxu0 0
        %1378 = vmatmul.mubr.bf16.gmra.mxu0 %v1217
        %v1379 = vpop.f32.mrf.mxu0
        %v1380 = vadd.f32 %v1239, %v1379
        %v1381 = vpop.f32.mrf.mxu0
        %v1382 = vpop.f32.mrf.mxu0
        %v1383 = vadd.f32 %v1239, %v1382
        %v1384 = vpop.f32.mrf.mxu0
        %1385 = vdwg.mxu0
        %1386 = vmax.xlane.f32.xlu0 %v1324
        %v1387 = vpop.xlane.xlu0 %1386
        %1388 = vmax.xlane.f32.xlu0 %v1327
        %v1389 = vpop.xlane.xlu0 %1388
        %1390 = vmax.xlane.f32.xlu0 %v1332
        %v1391 = vpop.xlane.xlu0 %1390
        %1392 = vmax.xlane.f32.xlu0 %v1335
        %v1393 = vpop.xlane.xlu0 %1392
        %1394 = vmax.xlane.f32.xlu0 %v1340
        %v1395 = vpop.xlane.xlu0 %1394
        %1396 = vmax.xlane.f32.xlu0 %v1343
        %v1397 = vpop.xlane.xlu0 %1396
        %1398 = vmax.xlane.f32.xlu0 %v1348
        %v1399 = vpop.xlane.xlu0 %1398
        %1400 = vmax.xlane.f32.xlu0 %v1351
        %v1401 = vpop.xlane.xlu0 %1400
        %1402 = vmax.xlane.f32.xlu0 %v1356
        %v1403 = vpop.xlane.xlu0 %1402
        %1404 = vmax.xlane.f32.xlu0 %v1359
        %v1405 = vpop.xlane.xlu0 %1404
        %1406 = vmax.xlane.f32.xlu0 %v1364
        %v1407 = vpop.xlane.xlu0 %1406
        %1408 = vmax.xlane.f32.xlu0 %v1367
        %v1409 = vpop.xlane.xlu0 %1408
        %1410 = vmax.xlane.f32.xlu0 %v1372
        %v1411 = vpop.xlane.xlu0 %1410
        %1412 = vmax.xlane.f32.xlu0 %v1375
        %v1413 = vpop.xlane.xlu0 %1412
        %1414 = vmax.xlane.f32.xlu0 %v1380
        %v1415 = vpop.xlane.xlu0 %1414
        %1416 = vmax.xlane.f32.xlu0 %v1383
        %v1417 = vpop.xlane.xlu0 %1416
        %v1418 = vsub.f32 %v1324, %v1387
        %v1419 = vsub.f32 %v1327, %v1389
        %v1420 = vsub.f32 %v1332, %v1391
        %v1421 = vsub.f32 %v1335, %v1393
        %v1422 = vsub.f32 %v1340, %v1395
        %v1423 = vsub.f32 %v1343, %v1397
        %v1424 = vsub.f32 %v1348, %v1399
        %v1425 = vsub.f32 %v1351, %v1401
        %v1426 = vsub.f32 %v1356, %v1403
        %v1427 = vsub.f32 %v1359, %v1405
        %v1428 = vsub.f32 %v1364, %v1407
        %v1429 = vsub.f32 %v1367, %v1409
        %v1430 = vsub.f32 %v1372, %v1411
        %v1431 = vsub.f32 %v1375, %v1413
        %v1432 = vsub.f32 %v1380, %v1415
        %v1433 = vsub.f32 %v1383, %v1417
        %v1434 = vmul.f32 %v1418, 1.442695
        %v1435 = vpow.pop %v1434
        %v1436 = vmul.f32 %v1419, 1.442695
        %v1437 = vpow.pop %v1436
        %v1438 = vmul.f32 %v1420, 1.442695
        %v1439 = vpow.pop %v1438
        %v1440 = vmul.f32 %v1421, 1.442695
        %v1441 = vpow.pop %v1440
        %v1442 = vmul.f32 %v1422, 1.442695
        %v1443 = vpow.pop %v1442
        %v1444 = vmul.f32 %v1423, 1.442695
        %v1445 = vpow.pop %v1444
        %v1446 = vmul.f32 %v1424, 1.442695
        %v1447 = vpow.pop %v1446
        %v1448 = vmul.f32 %v1425, 1.442695
        %v1449 = vpow.pop %v1448
        %v1450 = vmul.f32 %v1426, 1.442695
        %v1451 = vpow.pop %v1450
        %v1452 = vmul.f32 %v1427, 1.442695
        %v1453 = vpow.pop %v1452
        %v1454 = vmul.f32 %v1428, 1.442695
        %v1455 = vpow.pop %v1454
        %v1456 = vmul.f32 %v1429, 1.442695
        %v1457 = vpow.pop %v1456
        %v1458 = vmul.f32 %v1430, 1.442695
        %v1459 = vpow.pop %v1458
        %v1460 = vmul.f32 %v1431, 1.442695
        %v1461 = vpow.pop %v1460
        %v1462 = vmul.f32 %v1432, 1.442695
        %v1463 = vpow.pop %v1462
        %v1464 = vmul.f32 %v1433, 1.442695
        %v1465 = vpow.pop %v1464
        %1466 = vadd.xlane.f32.xlu0 %v1435
        %v1467 = vpop.xlane.xlu0 %1466
        %1468 = vadd.xlane.f32.xlu0 %v1437
        %v1469 = vpop.xlane.xlu0 %1468
        %1470 = vadd.xlane.f32.xlu0 %v1439
        %v1471 = vpop.xlane.xlu0 %1470
        %1472 = vadd.xlane.f32.xlu0 %v1441
        %v1473 = vpop.xlane.xlu0 %1472
        %1474 = vadd.xlane.f32.xlu0 %v1443
        %v1475 = vpop.xlane.xlu0 %1474
        %1476 = vadd.xlane.f32.xlu0 %v1445
        %v1477 = vpop.xlane.xlu0 %1476
        %1478 = vadd.xlane.f32.xlu0 %v1447
        %v1479 = vpop.xlane.xlu0 %1478
        %1480 = vadd.xlane.f32.xlu0 %v1449
        %v1481 = vpop.xlane.xlu0 %1480
        %1482 = vadd.xlane.f32.xlu0 %v1451
        %v1483 = vpop.xlane.xlu0 %1482
        %1484 = vadd.xlane.f32.xlu0 %v1453
        %v1485 = vpop.xlane.xlu0 %1484
        %1486 = vadd.xlane.f32.xlu0 %v1455
        %v1487 = vpop.xlane.xlu0 %1486
        %1488 = vadd.xlane.f32.xlu0 %v1457
        %v1489 = vpop.xlane.xlu0 %1488
        %1490 = vadd.xlane.f32.xlu0 %v1459
        %v1491 = vpop.xlane.xlu0 %1490
        %1492 = vadd.xlane.f32.xlu0 %v1461
        %v1493 = vpop.xlane.xlu0 %1492
        %1494 = vadd.xlane.f32.xlu0 %v1463
        %v1495 = vpop.xlane.xlu0 %1494
        %1496 = vadd.xlane.f32.xlu0 %v1465
        %v1497 = vpop.xlane.xlu0 %1496
        %v1498 = vrcp.pop %v1467
        %v1499 = vrcp.pop %v1469
        %v1500 = vrcp.pop %v1471
        %v1501 = vrcp.pop %v1473
        %v1502 = vrcp.pop %v1475
        %v1503 = vrcp.pop %v1477
        %v1504 = vrcp.pop %v1479
        %v1505 = vrcp.pop %v1481
        %v1506 = vrcp.pop %v1483
        %v1507 = vrcp.pop %v1485
        %v1508 = vrcp.pop %v1487
        %v1509 = vrcp.pop %v1489
        %v1510 = vrcp.pop %v1491
        %v1511 = vrcp.pop %v1493
        %v1512 = vrcp.pop %v1495
        %v1513 = vrcp.pop %v1497
        %v1514 = vmul.f32 %v1435, %v1498
        %v1515 = vmul.f32 %v1437, %v1499
        %v1516 = vmul.f32 %v1439, %v1500
        %v1517 = vmul.f32 %v1441, %v1501
        %v1518 = vmul.f32 %v1443, %v1502
        %v1519 = vmul.f32 %v1445, %v1503
        %v1520 = vmul.f32 %v1447, %v1504
        %v1521 = vmul.f32 %v1449, %v1505
        %v1522 = vmul.f32 %v1451, %v1506
        %v1523 = vmul.f32 %v1453, %v1507
        %v1524 = vmul.f32 %v1455, %v1508
        %v1525 = vmul.f32 %v1457, %v1509
        %v1526 = vmul.f32 %v1459, %v1510
        %v1527 = vmul.f32 %v1461, %v1511
        %v1528 = vmul.f32 %v1463, %v1512
        %v1529 = vmul.f32 %v1465, %v1513
        %v1530 = vld [vmem:[%s419] sm:$0xff]
        %v1531 = vld [vmem:[%s419 + $0x8] sm:$0xff]
        %v1532 = vld [vmem:[%s419 + $0x10] sm:$0xff]
        %v1533 = vld [vmem:[%s419 + $0x18] sm:$0xff]
        %v1534 = vld [vmem:[%s419 + $0x20] sm:$0xff]
        %v1535 = vld [vmem:[%s419 + $0x28] sm:$0xff]
        %v1536 = vld [vmem:[%s419 + $0x30] sm:$0xff]
        %v1537 = vld [vmem:[%s419 + $0x38] sm:$0xff]
        %v1538 = vld [vmem:[%s419 + $0x40] sm:$0xff]
        %v1539 = vld [vmem:[%s419 + $0x48] sm:$0xff]
        %v1540 = vld [vmem:[%s419 + $0x50] sm:$0xff]
        %v1541 = vld [vmem:[%s419 + $0x58] sm:$0xff]
        %v1542 = vld [vmem:[%s419 + $0x60] sm:$0xff]
        %v1543 = vld [vmem:[%s419 + $0x68] sm:$0xff]
        %v1544 = vld [vmem:[%s419 + $0x70] sm:$0xff]
        %v1545 = vld [vmem:[%s419 + $0x78] sm:$0xff]
        %v1546 = vmul.f32 %v1530, %v1514
        %v1547 = vmul.f32 %v1531, %v1515
        %v1548 = vmul.f32 %v1532, %v1516
        %v1549 = vmul.f32 %v1533, %v1517
        %v1550 = vmul.f32 %v1534, %v1518
        %v1551 = vmul.f32 %v1535, %v1519
        %v1552 = vmul.f32 %v1536, %v1520
        %v1553 = vmul.f32 %v1537, %v1521
        %v1554 = vmul.f32 %v1538, %v1522
        %v1555 = vmul.f32 %v1539, %v1523
        %v1556 = vmul.f32 %v1540, %v1524
        %v1557 = vmul.f32 %v1541, %v1525
        %v1558 = vmul.f32 %v1542, %v1526
        %v1559 = vmul.f32 %v1543, %v1527
        %v1560 = vmul.f32 %v1544, %v1528
        %v1561 = vmul.f32 %v1545, %v1529
        %1562 = vadd.xlane.f32.xlu0 %v1546
        %v1563 = vpop.xlane.xlu0 %1562
        %1564 = vadd.xlane.f32.xlu0 %v1547
        %v1565 = vpop.xlane.xlu0 %1564
        %1566 = vadd.xlane.f32.xlu0 %v1548
        %v1567 = vpop.xlane.xlu0 %1566
        %1568 = vadd.xlane.f32.xlu0 %v1549
        %v1569 = vpop.xlane.xlu0 %1568
        %1570 = vadd.xlane.f32.xlu0 %v1550
        %v1571 = vpop.xlane.xlu0 %1570
        %1572 = vadd.xlane.f32.xlu0 %v1551
        %v1573 = vpop.xlane.xlu0 %1572
        %1574 = vadd.xlane.f32.xlu0 %v1552
        %v1575 = vpop.xlane.xlu0 %1574
        %1576 = vadd.xlane.f32.xlu0 %v1553
        %v1577 = vpop.xlane.xlu0 %1576
        %1578 = vadd.xlane.f32.xlu0 %v1554
        %v1579 = vpop.xlane.xlu0 %1578
        %1580 = vadd.xlane.f32.xlu0 %v1555
        %v1581 = vpop.xlane.xlu0 %1580
        %1582 = vadd.xlane.f32.xlu0 %v1556
        %v1583 = vpop.xlane.xlu0 %1582
        %1584 = vadd.xlane.f32.xlu0 %v1557
        %v1585 = vpop.xlane.xlu0 %1584
        %1586 = vadd.xlane.f32.xlu0 %v1558
        %v1587 = vpop.xlane.xlu0 %1586
        %1588 = vadd.xlane.f32.xlu0 %v1559
        %v1589 = vpop.xlane.xlu0 %1588
        %1590 = vadd.xlane.f32.xlu0 %v1560
        %v1591 = vpop.xlane.xlu0 %1590
        %1592 = vadd.xlane.f32.xlu0 %v1561
        %v1593 = vpop.xlane.xlu0 %1592
        %vm1594 = vcmask 7168
        %1595 = vst.msk [vmem:[%s475] sm:$0xff] %vm1594, %v1563
        %1596 = vst.msk [vmem:[%s475 + $0x8] sm:$0xff] %vm1594, %v1565
        %1597 = vst.msk [vmem:[%s475 + $0x10] sm:$0xff] %vm1594, %v1567
        %1598 = vst.msk [vmem:[%s475 + $0x18] sm:$0xff] %vm1594, %v1569
        %1599 = vst.msk [vmem:[%s475 + $0x20] sm:$0xff] %vm1594, %v1571
        %1600 = vst.msk [vmem:[%s475 + $0x28] sm:$0xff] %vm1594, %v1573
        %1601 = vst.msk [vmem:[%s475 + $0x30] sm:$0xff] %vm1594, %v1575
        %1602 = vst.msk [vmem:[%s475 + $0x38] sm:$0xff] %vm1594, %v1577
        %1603 = vst.msk [vmem:[%s475 + $0x40] sm:$0xff] %vm1594, %v1579
        %1604 = vst.msk [vmem:[%s475 + $0x48] sm:$0xff] %vm1594, %v1581
        %1605 = vst.msk [vmem:[%s475 + $0x50] sm:$0xff] %vm1594, %v1583
        %1606 = vst.msk [vmem:[%s475 + $0x58] sm:$0xff] %vm1594, %v1585
        %1607 = vst.msk [vmem:[%s475 + $0x60] sm:$0xff] %vm1594, %v1587
        %1608 = vst.msk [vmem:[%s475 + $0x68] sm:$0xff] %vm1594, %v1589
        %1609 = vst.msk [vmem:[%s475 + $0x70] sm:$0xff] %vm1594, %v1591
        %1610 = vst.msk [vmem:[%s475 + $0x78] sm:$0xff] %vm1594, %v1593
        %s1611 = smul.u32 16, %s29
        %p1612 = scmp.lt.s32.totalorder %s1611, 47
        %s1613 = scalar_select %p1612, %s1611, 47
        %s1614 = smul.addr %s1613, 8
        %s1615 = scalar_lea.vmem %s8, %s1614
        // Predicated region
        $region77: #{tpu_custom_call.1} parent=51 // pred_check
          %p1616 = pneg %p235
        $region78: #{tpu_custom_call.1} parent=51 // pred_check_branch
          %1618 = sbr.rel (%p1616) target = $region80
        $region79: #{tpu_custom_call.1} parent=51 // pred_region
          %s1619 = smul.u32 16, %s29
        $region80: #{tpu_custom_call.1} parent=51 // pred_fallthru
          _
      $region52: #{tpu_custom_call.1} parent=5 // pred_fallthru
        _
      %p1620 = scmp.le.s32.totalorder 2, %s24
      // Predicated region
      $region81: #{tpu_custom_call.1} parent=5 // pred_check
        %p1621 = pneg %p1620
      $region82: #{tpu_custom_call.1} parent=5 // pred_check_branch
        %1623 = sbr.rel (%p1621) target = $region84
      $region83: #{tpu_custom_call.1} parent=5 // pred_region
        %s1624 = ssub.s32 %s24, 2
        // Predicated region
        $region85: #{tpu_custom_call.1} parent=83 // pred_check
          %p1625 = pneg %p241
        $region86: #{tpu_custom_call.1} parent=83 // pred_check_branch
          %1627 = sbr.rel (%p1625) target = $region88
        $region87: #{tpu_custom_call.1} parent=83 // pred_region
          %s1628 = smul.u32 16, %s30
          %p1629 = scmp.lt.s32.totalorder %s1628, 47
          %s1630 = scalar_select %p1629, %s1628, 47
          %s1631 = smul.addr %s1630, 8
          %s1632 = scalar_lea.vmem %s8, %s1631
        $region88: #{tpu_custom_call.1} parent=83 // pred_fallthru
          _
      $region84: #{tpu_custom_call.1} parent=5 // pred_fallthru
        _
    $region6: #{tpu_custom_call.1} parent=1 // loop_footer
      %s28 = sadd.s32 1, %s24
    $region7: #{tpu_custom_call.1} parent=1 // loop_footer_branch
      %23 = sbr.rel target = $region3
    $region8: #{tpu_custom_call.1} parent=1 // loop_exit
      _
    %1633 = vsyncpa [#allocation3], 1
    %s1634 = scalar_lea.sflag [#allocation3], 1
    %1635 = vsyncpa %s1634, 1
    %1636 = vsyncpa [#allocation5], 1
    %s1637 = scalar_lea.sflag [#allocation5], 1
    %1638 = vsyncpa %s1637, 1
    %1639 = vsyncpa [#allocation8], 1
    %1640 = vsyncpa [#allocation11], 1
    %s1641 = scalar_lea.sflag [#allocation11], 1
    %1642 = vsyncpa %s1641, 1

</llo_original>
